<compile_context>
chip_gen: v5e
topology: v5e:2x2
jax: 0.10.0
libtpu: 0.0.40
codegen_flags: <defaults>
</compile_context>

<pallas_src>
import math

import jax
import jax.numpy as jnp
from jax.experimental import pallas as pl
from jax.experimental.pallas import tpu as pltpu


# ----------------------------- hyper-parameters ------------------------------
N_MEL_CHANNELS = 16
REF_ENC_FILTERS = [4, 8, 16]          # K = 3 conv layers
REF_ENC_GRU_SIZE = 32
TOKEN_NUM = 8
TOKEN_EMBEDDING_SIZE = 32
NUM_HEADS = 4
BN_EPS = 1e-5


def calculate_channels(L, kernel_size, stride, pad, n_convs):
    for _ in range(n_convs):
        L = (L - kernel_size + 2 * pad) // stride + 1
    return L


# ----------------------------- fused Pallas kernel ---------------------------
def _conv_bn_relu(x, conv_mat, b_ind, bt_ind, gamma, beta):
    """x:[N,Fin] @ conv_mat:[Fin,Fout], then per-channel BN(train) + ReLU.

    b_ind:[Fout,C] / bt_ind:[C,Fout] are 0/1 channel-indicator matrices used to
    reduce / broadcast per-channel statistics with plain MXU matmuls.
    """
    y = jnp.dot(x, conv_mat, preferred_element_type=jnp.float32)      # [N, Fout]
    n_batch, f_out = y.shape
    c_out = gamma.shape[1]
    inv = 1.0 / (n_batch * (f_out // c_out))                          # 1/(N*H*W)
    # single-pass batch statistics (sum and sum of squares)
    csum = jnp.dot(jnp.sum(y, axis=0, keepdims=True), b_ind)          # [1, C]
    csum2 = jnp.dot(jnp.sum(y * y, axis=0, keepdims=True), b_ind)     # [1, C]
    mean = csum * inv
    var = jnp.maximum(csum2 * inv - mean * mean, 0.0)                 # biased var
    scale_c = gamma * jax.lax.rsqrt(var + BN_EPS)                     # [1, C]
    shift_c = beta - mean * scale_c                                   # [1, C]
    scale = jnp.dot(scale_c, bt_ind)                                  # [1, Fout]
    shift = jnp.dot(shift_c, bt_ind)
    return jnp.maximum(y * scale + shift, 0.0)                        # ReLU


def gst_kernel(
    x_ref,
    m1_ref, b1_ref, bt1_ref, g1_ref, be1_ref,
    m2_ref, b2_ref, bt2_ref, g2_ref, be2_ref,
    m3_ref, b3_ref, bt3_ref, g3_ref, be3_ref,
    wi_ref, bi_ref, wh_ref, bh_ref,
    emb_ref, wq_ref, wk_ref, wv_ref,
    o_ref,
):
    # ---- ReferenceEncoder conv stack (convs folded into dense matmuls) ------
    a = _conv_bn_relu(x_ref[...], m1_ref[...], b1_ref[...], bt1_ref[...],
                      g1_ref[...], be1_ref[...])
    a = _conv_bn_relu(a, m2_ref[...], b2_ref[...], bt2_ref[...],
                      g2_ref[...], be2_ref[...])
    a = _conv_bn_relu(a, m3_ref[...], b3_ref[...], bt3_ref[...],
                      g3_ref[...], be3_ref[...])                       # [N, C3*H3*W3]

    # ---- GRU (input projection + time-step selection hoisted out of loop) ---
    hid = wh_ref.shape[0]
    n_batch = a.shape[0]
    proj = jnp.dot(a, wi_ref[...], preferred_element_type=jnp.float32)  # [N, T*3H]
    t_steps = proj.shape[1] // (3 * hid)
    bi = bi_ref[...]
    bh = bh_ref[...]
    wh = wh_ref[...]
    h = jnp.zeros((n_batch, hid), jnp.float32)
    # T is tiny & static (time shrinks 8x through the stride-2 convs); a fully
    # unrolled static loop here is equivalent to lax.fori_loop(unroll=True).
    for t in range(t_steps):
        xg = proj[:, t * 3 * hid:(t + 1) * 3 * hid] + bi                # [N, 3H]
        hg = jnp.dot(h, wh, preferred_element_type=jnp.float32) + bh    # [N, 3H]
        r = jax.nn.sigmoid(xg[:, 0:hid] + hg[:, 0:hid])
        z = jax.nn.sigmoid(xg[:, hid:2 * hid] + hg[:, hid:2 * hid])
        n = jnp.tanh(xg[:, 2 * hid:3 * hid] + r * hg[:, 2 * hid:3 * hid])
        h = (1.0 - z) * n + z * h                                       # [N, H]

    # ---- STL: multi-head attention over the style tokens --------------------
    keys = jnp.tanh(emb_ref[...])                                       # [tok, d_k]
    q = jnp.dot(h, wq_ref[...], preferred_element_type=jnp.float32)     # [N, E]
    k = jnp.dot(keys, wk_ref[...], preferred_element_type=jnp.float32)  # [tok, E]
    v = jnp.dot(keys, wv_ref[...], preferred_element_type=jnp.float32)  # [tok, E]
    e_units = q.shape[1]
    split = e_units // NUM_HEADS
    inv_scale = 1.0 / math.sqrt(keys.shape[1])                          # / key_dim**0.5
    for i in range(NUM_HEADS):
        qh = q[:, i * split:(i + 1) * split]                            # [N, s]
        kh = k[:, i * split:(i + 1) * split]                            # [tok, s]
        vh = v[:, i * split:(i + 1) * split]                            # [tok, s]
        s = jax.lax.dot_general(qh, kh, (((1,), (1,)), ((), ())),
                                preferred_element_type=jnp.float32) * inv_scale
        s = s - jnp.max(s, axis=-1, keepdims=True)
        p = jnp.exp(s)
        p = p / jnp.sum(p, axis=-1, keepdims=True)                      # softmax
        oh = jnp.dot(p, vh, preferred_element_type=jnp.float32)         # [N, s]
        o_ref[:, i * split:(i + 1) * split] = oh.astype(o_ref.dtype)


# ----------------------------- parameters ------------------------------------
def init_params(key):
    """Random parameters in PyTorch layout."""
    k = jax.random.split(key, 12)
    filters = [1] + REF_ENC_FILTERS
    conv_w, bn_g, bn_b = [], [], []
    for i in range(len(REF_ENC_FILTERS)):
        cin, cout = filters[i], filters[i + 1]
        w = jax.random.normal(k[i], (cout, cin, 3, 3), jnp.float32) / jnp.sqrt(cin * 9.0)
        conv_w.append(w)
        bn_g.append(jnp.ones((cout,), jnp.float32))
        bn_b.append(jnp.zeros((cout,), jnp.float32))
    # NOTE: the Conv2d bias is intentionally omitted -- with training-mode
    # BatchNorm right after each conv it is cancelled by the mean subtraction.

    out_w = calculate_channels(N_MEL_CHANNELS, 3, 2, 1, len(REF_ENC_FILTERS))
    D = REF_ENC_FILTERS[-1] * out_w
    H = REF_ENC_GRU_SIZE
    si, sh = 1.0 / math.sqrt(D), 1.0 / math.sqrt(H)
    gru = dict(
        weight_ih=jax.random.normal(k[4], (3 * H, D), jnp.float32) * si,   # rows r|z|n
        weight_hh=jax.random.normal(k[5], (3 * H, H), jnp.float32) * sh,
        bias_ih=jax.random.normal(k[6], (3 * H,), jnp.float32) * sh,
        bias_hh=jax.random.normal(k[7], (3 * H,), jnp.float32) * sh,
    )

    d_q = REF_ENC_GRU_SIZE
    d_k = TOKEN_EMBEDDING_SIZE // NUM_HEADS
    E = TOKEN_EMBEDDING_SIZE
    stl = dict(
        embed=jax.random.normal(k[8], (TOKEN_NUM, d_k), jnp.float32) * 0.5,
        w_query=jax.random.normal(k[9], (d_q, E), jnp.float32) / math.sqrt(d_q),
        w_key=jax.random.normal(k[10], (d_k, E), jnp.float32) / math.sqrt(d_k),
        w_value=jax.random.normal(k[11], (d_k, E), jnp.float32) / math.sqrt(d_k),
    )
    return dict(conv_w=conv_w, bn_gamma=bn_g, bn_beta=bn_b, gru=gru, stl=stl)


def _conv_as_dense(w_oihw, cin, hin, win):
    """Dense M s.t. vec_nchw(conv2d(x, w, stride=2, pad=1)) = vec_nchw(x) @ M."""
    f_in = cin * hin * win
    basis = jnp.eye(f_in, dtype=jnp.float32).reshape(f_in, cin, hin, win)
    y = jax.lax.conv_general_dilated(
        basis, w_oihw, window_strides=(2, 2), padding=((1, 1), (1, 1)),
        dimension_numbers=("NCHW", "OIHW", "NCHW"))
    _, cout, hout, wout = y.shape
    return y.reshape(f_in, cout * hout * wout), cout, hout, wout


def prepare_params(params, ty):
    """One-time fold of PyTorch-layout params into the fused-kernel operands."""
    conv_ops = []
    cin, hin, win = 1, ty, N_MEL_CHANNELS
    for w, g, b in zip(params["conv_w"], params["bn_gamma"], params["bn_beta"]):
        m, cout, hout, wout = _conv_as_dense(w, cin, hin, win)
        ch = jnp.arange(cout * hout * wout) // (hout * wout)
        b_ind = (ch[:, None] == jnp.arange(cout)[None, :]).astype(jnp.float32)
        conv_ops += [m, b_ind, b_ind.T, g[None, :], b[None, :]]
        cin, hin, win = cout, hout, wout

    # Fold the PyTorch (NCHW -> transpose(1,2) -> view(N,T,-1)) feature
    # re-ordering into the GRU input weights so the hoisted input projection is
    # a single matmul on the NCHW-flat conv output.
    H = REF_ENC_GRU_SIZE
    c3, h3, w3 = cin, hin, win                     # T == h3
    wi = params["gru"]["weight_ih"].T              # [D, 3H], gate columns r|z|n
    wc = wi.reshape(c3, w3, 3 * H)
    big = jnp.zeros((c3, h3, w3, h3, 3 * H), jnp.float32)
    for t in range(h3):
        big = big.at[:, t, :, t, :].set(wc)
    wi_big = big.reshape(c3 * h3 * w3, h3 * 3 * H)

    gru_ops = [wi_big,
               params["gru"]["bias_ih"][None, :],
               params["gru"]["weight_hh"].T,
               params["gru"]["bias_hh"][None, :]]
    stl_ops = [params["stl"]["embed"], params["stl"]["w_query"],
               params["stl"]["w_key"], params["stl"]["w_value"]]
    return tuple(conv_ops + gru_ops + stl_ops)


# ----------------------------- forward ----------------------------------------
@jax.jit
def gst_forward(inputs, prep):
    """inputs: [N, Ty/r, n_mels*r] -> style embedding [N, 1, token_embedding_size]."""
    n_batch = inputs.shape[0]
    x0 = inputs.reshape(n_batch, -1)       # == inputs.view(N,1,-1,n_mels), NCHW-flat
    operands = (x0,) + tuple(prep)
    spec2d = lambda a: pl.BlockSpec(a.shape, lambda i: (0, 0))
    out = pl.pallas_call(
        gst_kernel,
        out_shape=jax.ShapeDtypeStruct((n_batch, TOKEN_EMBEDDING_SIZE), jnp.float32),
        grid=(1,),
        in_specs=[spec2d(a) for a in operands],
        out_specs=pl.BlockSpec((n_batch, TOKEN_EMBEDDING_SIZE), lambda i: (0, 0)),
        compiler_params=pltpu.CompilerParams(dimension_semantics=("arbitrary",)),
    )(*operands)
    # TODO(synk): pack_padded_sequence (input_lengths path) has no Pallas
    # equivalent here; this implements the input_lengths=None path only.
    return out[:, None, :]                 # GST returns [N, 1, token_embedding_size]


if __name__ == "__main__":
    key = jax.random.PRNGKey(0)
    k_in, k_par = jax.random.split(key)
    N, Ty = 2, 16
    inputs = jax.random.normal(k_in, (N, Ty, N_MEL_CHANNELS), jnp.float32)

    params = init_params(k_par)
    prep = prepare_params(params, Ty)

    out = gst_forward(inputs, prep)
    out = jax.block_until_ready(out)
    assert out.shape == (N, 1, TOKEN_EMBEDDING_SIZE), out.shape
    print("KERNEL_OK")
</pallas_src>

<mosaic_0001>
module attributes {stable_mosaic.version = 11 : i64} {
  func.func @gst_kernel(%arg0: i32, %arg1: memref<2x256xf32, #tpu.memory_space<vmem>>, %arg2: memref<256x256xf32, #tpu.memory_space<vmem>>, %arg3: memref<256x4xf32, #tpu.memory_space<vmem>>, %arg4: memref<4x256xf32, #tpu.memory_space<vmem>>, %arg5: memref<1x4xf32, #tpu.memory_space<vmem>>, %arg6: memref<1x4xf32, #tpu.memory_space<vmem>>, %arg7: memref<256x128xf32, #tpu.memory_space<vmem>>, %arg8: memref<128x8xf32, #tpu.memory_space<vmem>>, %arg9: memref<8x128xf32, #tpu.memory_space<vmem>>, %arg10: memref<1x8xf32, #tpu.memory_space<vmem>>, %arg11: memref<1x8xf32, #tpu.memory_space<vmem>>, %arg12: memref<128x64xf32, #tpu.memory_space<vmem>>, %arg13: memref<64x16xf32, #tpu.memory_space<vmem>>, %arg14: memref<16x64xf32, #tpu.memory_space<vmem>>, %arg15: memref<1x16xf32, #tpu.memory_space<vmem>>, %arg16: memref<1x16xf32, #tpu.memory_space<vmem>>, %arg17: memref<64x192xf32, #tpu.memory_space<vmem>>, %arg18: memref<1x96xf32, #tpu.memory_space<vmem>>, %arg19: memref<32x96xf32, #tpu.memory_space<vmem>>, %arg20: memref<1x96xf32, #tpu.memory_space<vmem>>, %arg21: memref<8x8xf32, #tpu.memory_space<vmem>>, %arg22: memref<32x32xf32, #tpu.memory_space<vmem>>, %arg23: memref<8x32xf32, #tpu.memory_space<vmem>>, %arg24: memref<8x32xf32, #tpu.memory_space<vmem>>, %arg25: memref<2x32xf32, #tpu.memory_space<vmem>>) attributes {dimension_semantics = [#tpu.dimension_semantics<arbitrary>], iteration_bounds = array<i64: 1>, scalar_prefetch = 0 : i64, scratch_operands = 0 : i64, tpu.core_type = #tpu.core_type<tc>, window_params = [{pipeline_mode = #tpu.pipeline_mode<synchronous>, transform_indices = @transform_0, window_bounds = array<i64: 2, 256>}, {pipeline_mode = #tpu.pipeline_mode<synchronous>, transform_indices = @transform_1, window_bounds = array<i64: 256, 256>}, {pipeline_mode = #tpu.pipeline_mode<synchronous>, transform_indices = @transform_2, window_bounds = array<i64: 256, 4>}, {pipeline_mode = #tpu.pipeline_mode<synchronous>, transform_indices = @transform_3, window_bounds = array<i64: 4, 256>}, {pipeline_mode = #tpu.pipeline_mode<synchronous>, transform_indices = @transform_4, window_bounds = array<i64: 1, 4>}, {pipeline_mode = #tpu.pipeline_mode<synchronous>, transform_indices = @transform_5, window_bounds = array<i64: 1, 4>}, {pipeline_mode = #tpu.pipeline_mode<synchronous>, transform_indices = @transform_6, window_bounds = array<i64: 256, 128>}, {pipeline_mode = #tpu.pipeline_mode<synchronous>, transform_indices = @transform_7, window_bounds = array<i64: 128, 8>}, {pipeline_mode = #tpu.pipeline_mode<synchronous>, transform_indices = @transform_8, window_bounds = array<i64: 8, 128>}, {pipeline_mode = #tpu.pipeline_mode<synchronous>, transform_indices = @transform_9, window_bounds = array<i64: 1, 8>}, {pipeline_mode = #tpu.pipeline_mode<synchronous>, transform_indices = @transform_10, window_bounds = array<i64: 1, 8>}, {pipeline_mode = #tpu.pipeline_mode<synchronous>, transform_indices = @transform_11, window_bounds = array<i64: 128, 64>}, {pipeline_mode = #tpu.pipeline_mode<synchronous>, transform_indices = @transform_12, window_bounds = array<i64: 64, 16>}, {pipeline_mode = #tpu.pipeline_mode<synchronous>, transform_indices = @transform_13, window_bounds = array<i64: 16, 64>}, {pipeline_mode = #tpu.pipeline_mode<synchronous>, transform_indices = @transform_14, window_bounds = array<i64: 1, 16>}, {pipeline_mode = #tpu.pipeline_mode<synchronous>, transform_indices = @transform_15, window_bounds = array<i64: 1, 16>}, {pipeline_mode = #tpu.pipeline_mode<synchronous>, transform_indices = @transform_16, window_bounds = array<i64: 64, 192>}, {pipeline_mode = #tpu.pipeline_mode<synchronous>, transform_indices = @transform_17, window_bounds = array<i64: 1, 96>}, {pipeline_mode = #tpu.pipeline_mode<synchronous>, transform_indices = @transform_18, window_bounds = array<i64: 32, 96>}, {pipeline_mode = #tpu.pipeline_mode<synchronous>, transform_indices = @transform_19, window_bounds = array<i64: 1, 96>}, {pipeline_mode = #tpu.pipeline_mode<synchronous>, transform_indices = @transform_20, window_bounds = array<i64: 8, 8>}, {pipeline_mode = #tpu.pipeline_mode<synchronous>, transform_indices = @transform_21, window_bounds = array<i64: 32, 32>}, {pipeline_mode = #tpu.pipeline_mode<synchronous>, transform_indices = @transform_22, window_bounds = array<i64: 8, 32>}, {pipeline_mode = #tpu.pipeline_mode<synchronous>, transform_indices = @transform_23, window_bounds = array<i64: 8, 32>}, {pipeline_mode = #tpu.pipeline_mode<synchronous>, transform_indices = @transform_24, window_bounds = array<i64: 2, 32>}]} {
    %c0 = arith.constant 0 : index
    %c0_0 = arith.constant 0 : index
    %0 = vector.load %arg1[%c0, %c0_0] : memref<2x256xf32, #tpu.memory_space<vmem>>, vector<2x256xf32>
    %c0_1 = arith.constant 0 : index
    %c0_2 = arith.constant 0 : index
    %1 = vector.load %arg2[%c0_1, %c0_2] : memref<256x256xf32, #tpu.memory_space<vmem>>, vector<256x256xf32>
    %c0_3 = arith.constant 0 : index
    %c0_4 = arith.constant 0 : index
    %2 = vector.load %arg3[%c0_3, %c0_4] : memref<256x4xf32, #tpu.memory_space<vmem>>, vector<256x4xf32>
    %c0_5 = arith.constant 0 : index
    %c0_6 = arith.constant 0 : index
    %3 = vector.load %arg4[%c0_5, %c0_6] : memref<4x256xf32, #tpu.memory_space<vmem>>, vector<4x256xf32>
    %c0_7 = arith.constant 0 : index
    %c0_8 = arith.constant 0 : index
    %4 = vector.load %arg5[%c0_7, %c0_8] : memref<1x4xf32, #tpu.memory_space<vmem>>, vector<1x4xf32>
    %c0_9 = arith.constant 0 : index
    %c0_10 = arith.constant 0 : index
    %5 = vector.load %arg6[%c0_9, %c0_10] : memref<1x4xf32, #tpu.memory_space<vmem>>, vector<1x4xf32>
    %cst = arith.constant dense<0.000000e+00> : vector<2x256xf32>
    %6 = tpu.matmul %0, %1, %cst {dimension_numbers = #tpu.dot_dimension_numbers<[1], [0], [0], [1], [0, 0, 1, 1], [], []>} : vector<2x256xf32>, vector<256x256xf32>, vector<2x256xf32> -> vector<2x256xf32>
    %cst_11 = arith.constant dense<0.000000e+00> : vector<256xf32>
    %7 = vector.multi_reduction <add>, %6, %cst_11 [0] : vector<2x256xf32> to vector<256xf32>
    %8 = vector.shape_cast %7 : vector<256xf32> to vector<1x256xf32>
    %cst_12 = arith.constant dense<0.000000e+00> : vector<1x4xf32>
    %9 = tpu.matmul %8, %2, %cst_12 {dimension_numbers = #tpu.dot_dimension_numbers<[1], [0], [0], [1], [0, 0, 1, 1], [], []>} : vector<1x256xf32>, vector<256x4xf32>, vector<1x4xf32> -> vector<1x4xf32>
    %10 = arith.mulf %6, %6 : vector<2x256xf32>
    %cst_13 = arith.constant dense<0.000000e+00> : vector<256xf32>
    %11 = vector.multi_reduction <add>, %10, %cst_13 [0] : vector<2x256xf32> to vector<256xf32>
    %12 = vector.shape_cast %11 : vector<256xf32> to vector<1x256xf32>
    %cst_14 = arith.constant dense<0.000000e+00> : vector<1x4xf32>
    %13 = tpu.matmul %12, %2, %cst_14 {dimension_numbers = #tpu.dot_dimension_numbers<[1], [0], [0], [1], [0, 0, 1, 1], [], []>} : vector<1x256xf32>, vector<256x4xf32>, vector<1x4xf32> -> vector<1x4xf32>
    %cst_15 = arith.constant 7.812500e-03 : f32
    %14 = vector.broadcast %cst_15 : f32 to vector<1x4xf32>
    %15 = arith.mulf %9, %14 : vector<1x4xf32>
    %cst_16 = arith.constant 7.812500e-03 : f32
    %16 = vector.broadcast %cst_16 : f32 to vector<1x4xf32>
    %17 = arith.mulf %13, %16 : vector<1x4xf32>
    %18 = arith.mulf %15, %15 : vector<1x4xf32>
    %19 = arith.subf %17, %18 : vector<1x4xf32>
    %cst_17 = arith.constant 0.000000e+00 : f32
    %20 = vector.broadcast %cst_17 : f32 to vector<1x4xf32>
    %21 = arith.maximumf %19, %20 : vector<1x4xf32>
    %cst_18 = arith.constant 9.99999974E-6 : f32
    %22 = vector.broadcast %cst_18 : f32 to vector<1x4xf32>
    %23 = arith.addf %21, %22 : vector<1x4xf32>
    %24 = math.rsqrt %23 : vector<1x4xf32>
    %25 = arith.mulf %4, %24 : vector<1x4xf32>
    %26 = arith.mulf %15, %25 : vector<1x4xf32>
    %27 = arith.subf %5, %26 : vector<1x4xf32>
    %cst_19 = arith.constant dense<0.000000e+00> : vector<1x256xf32>
    %28 = tpu.matmul %25, %3, %cst_19 {dimension_numbers = #tpu.dot_dimension_numbers<[1], [0], [0], [1], [0, 0, 1, 1], [], []>} : vector<1x4xf32>, vector<4x256xf32>, vector<1x256xf32> -> vector<1x256xf32>
    %cst_20 = arith.constant dense<0.000000e+00> : vector<1x256xf32>
    %29 = tpu.matmul %27, %3, %cst_20 {dimension_numbers = #tpu.dot_dimension_numbers<[1], [0], [0], [1], [0, 0, 1, 1], [], []>} : vector<1x4xf32>, vector<4x256xf32>, vector<1x256xf32> -> vector<1x256xf32>
    %30 = vector.broadcast %28 : vector<1x256xf32> to vector<2x256xf32>
    %31 = arith.mulf %6, %30 : vector<2x256xf32>
    %32 = vector.broadcast %29 : vector<1x256xf32> to vector<2x256xf32>
    %33 = arith.addf %31, %32 : vector<2x256xf32>
    %cst_21 = arith.constant 0.000000e+00 : f32
    %34 = vector.broadcast %cst_21 : f32 to vector<2x256xf32>
    %35 = arith.maximumf %33, %34 : vector<2x256xf32>
    %c0_22 = arith.constant 0 : index
    %c0_23 = arith.constant 0 : index
    %36 = vector.load %arg7[%c0_22, %c0_23] : memref<256x128xf32, #tpu.memory_space<vmem>>, vector<256x128xf32>
    %c0_24 = arith.constant 0 : index
    %c0_25 = arith.constant 0 : index
    %37 = vector.load %arg8[%c0_24, %c0_25] : memref<128x8xf32, #tpu.memory_space<vmem>>, vector<128x8xf32>
    %c0_26 = arith.constant 0 : index
    %c0_27 = arith.constant 0 : index
    %38 = vector.load %arg9[%c0_26, %c0_27] : memref<8x128xf32, #tpu.memory_space<vmem>>, vector<8x128xf32>
    %c0_28 = arith.constant 0 : index
    %c0_29 = arith.constant 0 : index
    %39 = vector.load %arg10[%c0_28, %c0_29] : memref<1x8xf32, #tpu.memory_space<vmem>>, vector<1x8xf32>
    %c0_30 = arith.constant 0 : index
    %c0_31 = arith.constant 0 : index
    %40 = vector.load %arg11[%c0_30, %c0_31] : memref<1x8xf32, #tpu.memory_space<vmem>>, vector<1x8xf32>
    %cst_32 = arith.constant dense<0.000000e+00> : vector<2x128xf32>
    %41 = tpu.matmul %35, %36, %cst_32 {dimension_numbers = #tpu.dot_dimension_numbers<[1], [0], [0], [1], [0, 0, 1, 1], [], []>} : vector<2x256xf32>, vector<256x128xf32>, vector<2x128xf32> -> vector<2x128xf32>
    %cst_33 = arith.constant dense<0.000000e+00> : vector<128xf32>
    %42 = vector.multi_reduction <add>, %41, %cst_33 [0] : vector<2x128xf32> to vector<128xf32>
    %43 = vector.shape_cast %42 : vector<128xf32> to vector<1x128xf32>
    %cst_34 = arith.constant dense<0.000000e+00> : vector<1x8xf32>
    %44 = tpu.matmul %43, %37, %cst_34 {dimension_numbers = #tpu.dot_dimension_numbers<[1], [0], [0], [1], [0, 0, 1, 1], [], []>} : vector<1x128xf32>, vector<128x8xf32>, vector<1x8xf32> -> vector<1x8xf32>
    %45 = arith.mulf %41, %41 : vector<2x128xf32>
    %cst_35 = arith.constant dense<0.000000e+00> : vector<128xf32>
    %46 = vector.multi_reduction <add>, %45, %cst_35 [0] : vector<2x128xf32> to vector<128xf32>
    %47 = vector.shape_cast %46 : vector<128xf32> to vector<1x128xf32>
    %cst_36 = arith.constant dense<0.000000e+00> : vector<1x8xf32>
    %48 = tpu.matmul %47, %37, %cst_36 {dimension_numbers = #tpu.dot_dimension_numbers<[1], [0], [0], [1], [0, 0, 1, 1], [], []>} : vector<1x128xf32>, vector<128x8xf32>, vector<1x8xf32> -> vector<1x8xf32>
    %cst_37 = arith.constant 3.125000e-02 : f32
    %49 = vector.broadcast %cst_37 : f32 to vector<1x8xf32>
    %50 = arith.mulf %44, %49 : vector<1x8xf32>
    %cst_38 = arith.constant 3.125000e-02 : f32
    %51 = vector.broadcast %cst_38 : f32 to vector<1x8xf32>
    %52 = arith.mulf %48, %51 : vector<1x8xf32>
    %53 = arith.mulf %50, %50 : vector<1x8xf32>
    %54 = arith.subf %52, %53 : vector<1x8xf32>
    %cst_39 = arith.constant 0.000000e+00 : f32
    %55 = vector.broadcast %cst_39 : f32 to vector<1x8xf32>
    %56 = arith.maximumf %54, %55 : vector<1x8xf32>
    %cst_40 = arith.constant 9.99999974E-6 : f32
    %57 = vector.broadcast %cst_40 : f32 to vector<1x8xf32>
    %58 = arith.addf %56, %57 : vector<1x8xf32>
    %59 = math.rsqrt %58 : vector<1x8xf32>
    %60 = arith.mulf %39, %59 : vector<1x8xf32>
    %61 = arith.mulf %50, %60 : vector<1x8xf32>
    %62 = arith.subf %40, %61 : vector<1x8xf32>
    %cst_41 = arith.constant dense<0.000000e+00> : vector<1x128xf32>
    %63 = tpu.matmul %60, %38, %cst_41 {dimension_numbers = #tpu.dot_dimension_numbers<[1], [0], [0], [1], [0, 0, 1, 1], [], []>} : vector<1x8xf32>, vector<8x128xf32>, vector<1x128xf32> -> vector<1x128xf32>
    %cst_42 = arith.constant dense<0.000000e+00> : vector<1x128xf32>
    %64 = tpu.matmul %62, %38, %cst_42 {dimension_numbers = #tpu.dot_dimension_numbers<[1], [0], [0], [1], [0, 0, 1, 1], [], []>} : vector<1x8xf32>, vector<8x128xf32>, vector<1x128xf32> -> vector<1x128xf32>
    %65 = vector.broadcast %63 : vector<1x128xf32> to vector<2x128xf32>
    %66 = arith.mulf %41, %65 : vector<2x128xf32>
    %67 = vector.broadcast %64 : vector<1x128xf32> to vector<2x128xf32>
    %68 = arith.addf %66, %67 : vector<2x128xf32>
    %cst_43 = arith.constant 0.000000e+00 : f32
    %69 = vector.broadcast %cst_43 : f32 to vector<2x128xf32>
    %70 = arith.maximumf %68, %69 : vector<2x128xf32>
    %c0_44 = arith.constant 0 : index
    %c0_45 = arith.constant 0 : index
    %71 = vector.load %arg12[%c0_44, %c0_45] : memref<128x64xf32, #tpu.memory_space<vmem>>, vector<128x64xf32>
    %c0_46 = arith.constant 0 : index
    %c0_47 = arith.constant 0 : index
    %72 = vector.load %arg13[%c0_46, %c0_47] : memref<64x16xf32, #tpu.memory_space<vmem>>, vector<64x16xf32>
    %c0_48 = arith.constant 0 : index
    %c0_49 = arith.constant 0 : index
    %73 = vector.load %arg14[%c0_48, %c0_49] : memref<16x64xf32, #tpu.memory_space<vmem>>, vector<16x64xf32>
    %c0_50 = arith.constant 0 : index
    %c0_51 = arith.constant 0 : index
    %74 = vector.load %arg15[%c0_50, %c0_51] : memref<1x16xf32, #tpu.memory_space<vmem>>, vector<1x16xf32>
    %c0_52 = arith.constant 0 : index
    %c0_53 = arith.constant 0 : index
    %75 = vector.load %arg16[%c0_52, %c0_53] : memref<1x16xf32, #tpu.memory_space<vmem>>, vector<1x16xf32>
    %cst_54 = arith.constant dense<0.000000e+00> : vector<2x64xf32>
    %76 = tpu.matmul %70, %71, %cst_54 {dimension_numbers = #tpu.dot_dimension_numbers<[1], [0], [0], [1], [0, 0, 1, 1], [], []>} : vector<2x128xf32>, vector<128x64xf32>, vector<2x64xf32> -> vector<2x64xf32>
    %cst_55 = arith.constant dense<0.000000e+00> : vector<64xf32>
    %77 = vector.multi_reduction <add>, %76, %cst_55 [0] : vector<2x64xf32> to vector<64xf32>
    %78 = vector.shape_cast %77 : vector<64xf32> to vector<1x64xf32>
    %cst_56 = arith.constant dense<0.000000e+00> : vector<1x16xf32>
    %79 = tpu.matmul %78, %72, %cst_56 {dimension_numbers = #tpu.dot_dimension_numbers<[1], [0], [0], [1], [0, 0, 1, 1], [], []>} : vector<1x64xf32>, vector<64x16xf32>, vector<1x16xf32> -> vector<1x16xf32>
    %80 = arith.mulf %76, %76 : vector<2x64xf32>
    %cst_57 = arith.constant dense<0.000000e+00> : vector<64xf32>
    %81 = vector.multi_reduction <add>, %80, %cst_57 [0] : vector<2x64xf32> to vector<64xf32>
    %82 = vector.shape_cast %81 : vector<64xf32> to vector<1x64xf32>
    %cst_58 = arith.constant dense<0.000000e+00> : vector<1x16xf32>
    %83 = tpu.matmul %82, %72, %cst_58 {dimension_numbers = #tpu.dot_dimension_numbers<[1], [0], [0], [1], [0, 0, 1, 1], [], []>} : vector<1x64xf32>, vector<64x16xf32>, vector<1x16xf32> -> vector<1x16xf32>
    %cst_59 = arith.constant 1.250000e-01 : f32
    %84 = vector.broadcast %cst_59 : f32 to vector<1x16xf32>
    %85 = arith.mulf %79, %84 : vector<1x16xf32>
    %cst_60 = arith.constant 1.250000e-01 : f32
    %86 = vector.broadcast %cst_60 : f32 to vector<1x16xf32>
    %87 = arith.mulf %83, %86 : vector<1x16xf32>
    %88 = arith.mulf %85, %85 : vector<1x16xf32>
    %89 = arith.subf %87, %88 : vector<1x16xf32>
    %cst_61 = arith.constant 0.000000e+00 : f32
    %90 = vector.broadcast %cst_61 : f32 to vector<1x16xf32>
    %91 = arith.maximumf %89, %90 : vector<1x16xf32>
    %cst_62 = arith.constant 9.99999974E-6 : f32
    %92 = vector.broadcast %cst_62 : f32 to vector<1x16xf32>
    %93 = arith.addf %91, %92 : vector<1x16xf32>
    %94 = math.rsqrt %93 : vector<1x16xf32>
    %95 = arith.mulf %74, %94 : vector<1x16xf32>
    %96 = arith.mulf %85, %95 : vector<1x16xf32>
    %97 = arith.subf %75, %96 : vector<1x16xf32>
    %cst_63 = arith.constant dense<0.000000e+00> : vector<1x64xf32>
    %98 = tpu.matmul %95, %73, %cst_63 {dimension_numbers = #tpu.dot_dimension_numbers<[1], [0], [0], [1], [0, 0, 1, 1], [], []>} : vector<1x16xf32>, vector<16x64xf32>, vector<1x64xf32> -> vector<1x64xf32>
    %cst_64 = arith.constant dense<0.000000e+00> : vector<1x64xf32>
    %99 = tpu.matmul %97, %73, %cst_64 {dimension_numbers = #tpu.dot_dimension_numbers<[1], [0], [0], [1], [0, 0, 1, 1], [], []>} : vector<1x16xf32>, vector<16x64xf32>, vector<1x64xf32> -> vector<1x64xf32>
    %100 = vector.broadcast %98 : vector<1x64xf32> to vector<2x64xf32>
    %101 = arith.mulf %76, %100 : vector<2x64xf32>
    %102 = vector.broadcast %99 : vector<1x64xf32> to vector<2x64xf32>
    %103 = arith.addf %101, %102 : vector<2x64xf32>
    %cst_65 = arith.constant 0.000000e+00 : f32
    %104 = vector.broadcast %cst_65 : f32 to vector<2x64xf32>
    %105 = arith.maximumf %103, %104 : vector<2x64xf32>
    %c0_66 = arith.constant 0 : index
    %c0_67 = arith.constant 0 : index
    %106 = vector.load %arg17[%c0_66, %c0_67] : memref<64x192xf32, #tpu.memory_space<vmem>>, vector<64x192xf32>
    %cst_68 = arith.constant dense<0.000000e+00> : vector<2x192xf32>
    %107 = tpu.matmul %105, %106, %cst_68 {dimension_numbers = #tpu.dot_dimension_numbers<[1], [0], [0], [1], [0, 0, 1, 1], [], []>} : vector<2x64xf32>, vector<64x192xf32>, vector<2x192xf32> -> vector<2x192xf32>
    %c0_69 = arith.constant 0 : index
    %c0_70 = arith.constant 0 : index
    %108 = vector.load %arg18[%c0_69, %c0_70] : memref<1x96xf32, #tpu.memory_space<vmem>>, vector<1x96xf32>
    %c0_71 = arith.constant 0 : index
    %c0_72 = arith.constant 0 : index
    %109 = vector.load %arg20[%c0_71, %c0_72] : memref<1x96xf32, #tpu.memory_space<vmem>>, vector<1x96xf32>
    %c0_73 = arith.constant 0 : index
    %c0_74 = arith.constant 0 : index
    %110 = vector.load %arg19[%c0_73, %c0_74] : memref<32x96xf32, #tpu.memory_space<vmem>>, vector<32x96xf32>
    %cst_75 = arith.constant 0.000000e+00 : f32
    %111 = vector.broadcast %cst_75 : f32 to vector<2x32xf32>
    %112 = vector.extract_strided_slice %107 {offsets = [0, 0], sizes = [2, 96], strides = [1, 1]} : vector<2x192xf32> to vector<2x96xf32>
    %113 = vector.broadcast %108 : vector<1x96xf32> to vector<2x96xf32>
    %114 = arith.addf %112, %113 : vector<2x96xf32>
    %cst_76 = arith.constant dense<0.000000e+00> : vector<2x96xf32>
    %115 = tpu.matmul %111, %110, %cst_76 {dimension_numbers = #tpu.dot_dimension_numbers<[1], [0], [0], [1], [0, 0, 1, 1], [], []>} : vector<2x32xf32>, vector<32x96xf32>, vector<2x96xf32> -> vector<2x96xf32>
    %116 = vector.broadcast %109 : vector<1x96xf32> to vector<2x96xf32>
    %117 = arith.addf %115, %116 : vector<2x96xf32>
    %118 = vector.extract_strided_slice %114 {offsets = [0, 0], sizes = [2, 32], strides = [1, 1]} : vector<2x96xf32> to vector<2x32xf32>
    %119 = vector.extract_strided_slice %117 {offsets = [0, 0], sizes = [2, 32], strides = [1, 1]} : vector<2x96xf32> to vector<2x32xf32>
    %120 = arith.addf %118, %119 : vector<2x32xf32>
    %121 = arith.negf %120 : vector<2x32xf32>
    %122 = math.exp %121 : vector<2x32xf32>
    %cst_77 = arith.constant 1.000000e+00 : f32
    %123 = vector.broadcast %cst_77 : f32 to vector<2x32xf32>
    %124 = arith.addf %123, %122 : vector<2x32xf32>
    %125 = arith.divf %123, %124 : vector<2x32xf32>
    %126 = vector.extract_strided_slice %114 {offsets = [0, 32], sizes = [2, 32], strides = [1, 1]} : vector<2x96xf32> to vector<2x32xf32>
    %127 = vector.extract_strided_slice %117 {offsets = [0, 32], sizes = [2, 32], strides = [1, 1]} : vector<2x96xf32> to vector<2x32xf32>
    %128 = arith.addf %126, %127 : vector<2x32xf32>
    %129 = arith.negf %128 : vector<2x32xf32>
    %130 = math.exp %129 : vector<2x32xf32>
    %cst_78 = arith.constant 1.000000e+00 : f32
    %131 = vector.broadcast %cst_78 : f32 to vector<2x32xf32>
    %132 = arith.addf %131, %130 : vector<2x32xf32>
    %133 = arith.divf %131, %132 : vector<2x32xf32>
    %134 = vector.extract_strided_slice %114 {offsets = [0, 64], sizes = [2, 32], strides = [1, 1]} : vector<2x96xf32> to vector<2x32xf32>
    %135 = vector.extract_strided_slice %117 {offsets = [0, 64], sizes = [2, 32], strides = [1, 1]} : vector<2x96xf32> to vector<2x32xf32>
    %136 = arith.mulf %125, %135 : vector<2x32xf32>
    %137 = arith.addf %134, %136 : vector<2x32xf32>
    %138 = math.tanh %137 : vector<2x32xf32>
    %cst_79 = arith.constant 1.000000e+00 : f32
    %139 = vector.broadcast %cst_79 : f32 to vector<2x32xf32>
    %140 = arith.subf %139, %133 : vector<2x32xf32>
    %141 = arith.mulf %140, %138 : vector<2x32xf32>
    %142 = arith.mulf %133, %111 : vector<2x32xf32>
    %143 = arith.addf %141, %142 : vector<2x32xf32>
    %144 = vector.extract_strided_slice %107 {offsets = [0, 96], sizes = [2, 96], strides = [1, 1]} : vector<2x192xf32> to vector<2x96xf32>
    %145 = vector.broadcast %108 : vector<1x96xf32> to vector<2x96xf32>
    %146 = arith.addf %144, %145 : vector<2x96xf32>
    %cst_80 = arith.constant dense<0.000000e+00> : vector<2x96xf32>
    %147 = tpu.matmul %143, %110, %cst_80 {dimension_numbers = #tpu.dot_dimension_numbers<[1], [0], [0], [1], [0, 0, 1, 1], [], []>} : vector<2x32xf32>, vector<32x96xf32>, vector<2x96xf32> -> vector<2x96xf32>
    %148 = vector.broadcast %109 : vector<1x96xf32> to vector<2x96xf32>
    %149 = arith.addf %147, %148 : vector<2x96xf32>
    %150 = vector.extract_strided_slice %146 {offsets = [0, 0], sizes = [2, 32], strides = [1, 1]} : vector<2x96xf32> to vector<2x32xf32>
    %151 = vector.extract_strided_slice %149 {offsets = [0, 0], sizes = [2, 32], strides = [1, 1]} : vector<2x96xf32> to vector<2x32xf32>
    %152 = arith.addf %150, %151 : vector<2x32xf32>
    %153 = arith.negf %152 : vector<2x32xf32>
    %154 = math.exp %153 : vector<2x32xf32>
    %cst_81 = arith.constant 1.000000e+00 : f32
    %155 = vector.broadcast %cst_81 : f32 to vector<2x32xf32>
    %156 = arith.addf %155, %154 : vector<2x32xf32>
    %157 = arith.divf %155, %156 : vector<2x32xf32>
    %158 = vector.extract_strided_slice %146 {offsets = [0, 32], sizes = [2, 32], strides = [1, 1]} : vector<2x96xf32> to vector<2x32xf32>
    %159 = vector.extract_strided_slice %149 {offsets = [0, 32], sizes = [2, 32], strides = [1, 1]} : vector<2x96xf32> to vector<2x32xf32>
    %160 = arith.addf %158, %159 : vector<2x32xf32>
    %161 = arith.negf %160 : vector<2x32xf32>
    %162 = math.exp %161 : vector<2x32xf32>
    %cst_82 = arith.constant 1.000000e+00 : f32
    %163 = vector.broadcast %cst_82 : f32 to vector<2x32xf32>
    %164 = arith.addf %163, %162 : vector<2x32xf32>
    %165 = arith.divf %163, %164 : vector<2x32xf32>
    %166 = vector.extract_strided_slice %146 {offsets = [0, 64], sizes = [2, 32], strides = [1, 1]} : vector<2x96xf32> to vector<2x32xf32>
    %167 = vector.extract_strided_slice %149 {offsets = [0, 64], sizes = [2, 32], strides = [1, 1]} : vector<2x96xf32> to vector<2x32xf32>
    %168 = arith.mulf %157, %167 : vector<2x32xf32>
    %169 = arith.addf %166, %168 : vector<2x32xf32>
    %170 = math.tanh %169 : vector<2x32xf32>
    %cst_83 = arith.constant 1.000000e+00 : f32
    %171 = vector.broadcast %cst_83 : f32 to vector<2x32xf32>
    %172 = arith.subf %171, %165 : vector<2x32xf32>
    %173 = arith.mulf %172, %170 : vector<2x32xf32>
    %174 = arith.mulf %165, %143 : vector<2x32xf32>
    %175 = arith.addf %173, %174 : vector<2x32xf32>
    %c0_84 = arith.constant 0 : index
    %c0_85 = arith.constant 0 : index
    %176 = vector.load %arg21[%c0_84, %c0_85] : memref<8x8xf32, #tpu.memory_space<vmem>>, vector<8x8xf32>
    %177 = math.tanh %176 : vector<8x8xf32>
    %c0_86 = arith.constant 0 : index
    %c0_87 = arith.constant 0 : index
    %178 = vector.load %arg22[%c0_86, %c0_87] : memref<32x32xf32, #tpu.memory_space<vmem>>, vector<32x32xf32>
    %cst_88 = arith.constant dense<0.000000e+00> : vector<2x32xf32>
    %179 = tpu.matmul %175, %178, %cst_88 {dimension_numbers = #tpu.dot_dimension_numbers<[1], [0], [0], [1], [0, 0, 1, 1], [], []>} : vector<2x32xf32>, vector<32x32xf32>, vector<2x32xf32> -> vector<2x32xf32>
    %c0_89 = arith.constant 0 : index
    %c0_90 = arith.constant 0 : index
    %180 = vector.load %arg23[%c0_89, %c0_90] : memref<8x32xf32, #tpu.memory_space<vmem>>, vector<8x32xf32>
    %cst_91 = arith.constant dense<0.000000e+00> : vector<8x32xf32>
    %181 = tpu.matmul %177, %180, %cst_91 {dimension_numbers = #tpu.dot_dimension_numbers<[1], [0], [0], [1], [0, 0, 1, 1], [], []>} : vector<8x8xf32>, vector<8x32xf32>, vector<8x32xf32> -> vector<8x32xf32>
    %c0_92 = arith.constant 0 : index
    %c0_93 = arith.constant 0 : index
    %182 = vector.load %arg24[%c0_92, %c0_93] : memref<8x32xf32, #tpu.memory_space<vmem>>, vector<8x32xf32>
    %cst_94 = arith.constant dense<0.000000e+00> : vector<8x32xf32>
    %183 = tpu.matmul %177, %182, %cst_94 {dimension_numbers = #tpu.dot_dimension_numbers<[1], [0], [0], [1], [0, 0, 1, 1], [], []>} : vector<8x8xf32>, vector<8x32xf32>, vector<8x32xf32> -> vector<8x32xf32>
    %184 = vector.extract_strided_slice %179 {offsets = [0, 0], sizes = [2, 8], strides = [1, 1]} : vector<2x32xf32> to vector<2x8xf32>
    %185 = vector.extract_strided_slice %181 {offsets = [0, 0], sizes = [8, 8], strides = [1, 1]} : vector<8x32xf32> to vector<8x8xf32>
    %186 = vector.extract_strided_slice %183 {offsets = [0, 0], sizes = [8, 8], strides = [1, 1]} : vector<8x32xf32> to vector<8x8xf32>
    %cst_95 = arith.constant dense<0.000000e+00> : vector<2x8xf32>
    %187 = tpu.matmul %184, %185, %cst_95 {dimension_numbers = #tpu.dot_dimension_numbers<[1], [1], [0], [0], [0, 0, 1, 0], [], []>} : vector<2x8xf32>, vector<8x8xf32>, vector<2x8xf32> -> vector<2x8xf32>
    %cst_96 = arith.constant 0.353553385 : f32
    %188 = vector.broadcast %cst_96 : f32 to vector<2x8xf32>
    %189 = arith.mulf %187, %188 : vector<2x8xf32>
    %cst_97 = arith.constant dense<0xFF800000> : vector<2xf32>
    %190 = vector.multi_reduction <maximumf>, %189, %cst_97 [1] : vector<2x8xf32> to vector<2xf32>
    %191 = vector.shape_cast %190 : vector<2xf32> to vector<2x1xf32>
    %192 = vector.broadcast %191 : vector<2x1xf32> to vector<2x8xf32>
    %193 = arith.subf %189, %192 : vector<2x8xf32>
    %194 = math.exp %193 : vector<2x8xf32>
    %cst_98 = arith.constant dense<0.000000e+00> : vector<2xf32>
    %195 = vector.multi_reduction <add>, %194, %cst_98 [1] : vector<2x8xf32> to vector<2xf32>
    %196 = vector.shape_cast %195 : vector<2xf32> to vector<2x1xf32>
    %197 = vector.broadcast %196 : vector<2x1xf32> to vector<2x8xf32>
    %198 = arith.divf %194, %197 : vector<2x8xf32>
    %cst_99 = arith.constant dense<0.000000e+00> : vector<2x8xf32>
    %199 = tpu.matmul %198, %186, %cst_99 {dimension_numbers = #tpu.dot_dimension_numbers<[1], [0], [0], [1], [0, 0, 1, 1], [], []>} : vector<2x8xf32>, vector<8x8xf32>, vector<2x8xf32> -> vector<2x8xf32>
    %c0_100 = arith.constant 0 : index
    %c0_101 = arith.constant 0 : index
    %200 = vector.load %arg25[%c0_100, %c0_101] : memref<2x32xf32, #tpu.memory_space<vmem>>, vector<2x8xf32>
    tpu.vector_store %arg25[%c0_100, %c0_101], %199 {strides = array<i32>} : memref<2x32xf32, #tpu.memory_space<vmem>>, vector<2x8xf32>,
    %201 = vector.extract_strided_slice %179 {offsets = [0, 8], sizes = [2, 8], strides = [1, 1]} : vector<2x32xf32> to vector<2x8xf32>
    %202 = vector.extract_strided_slice %181 {offsets = [0, 8], sizes = [8, 8], strides = [1, 1]} : vector<8x32xf32> to vector<8x8xf32>
    %203 = vector.extract_strided_slice %183 {offsets = [0, 8], sizes = [8, 8], strides = [1, 1]} : vector<8x32xf32> to vector<8x8xf32>
    %cst_102 = arith.constant dense<0.000000e+00> : vector<2x8xf32>
    %204 = tpu.matmul %201, %202, %cst_102 {dimension_numbers = #tpu.dot_dimension_numbers<[1], [1], [0], [0], [0, 0, 1, 0], [], []>} : vector<2x8xf32>, vector<8x8xf32>, vector<2x8xf32> -> vector<2x8xf32>
    %cst_103 = arith.constant 0.353553385 : f32
    %205 = vector.broadcast %cst_103 : f32 to vector<2x8xf32>
    %206 = arith.mulf %204, %205 : vector<2x8xf32>
    %cst_104 = arith.constant dense<0xFF800000> : vector<2xf32>
    %207 = vector.multi_reduction <maximumf>, %206, %cst_104 [1] : vector<2x8xf32> to vector<2xf32>
    %208 = vector.shape_cast %207 : vector<2xf32> to vector<2x1xf32>
    %209 = vector.broadcast %208 : vector<2x1xf32> to vector<2x8xf32>
    %210 = arith.subf %206, %209 : vector<2x8xf32>
    %211 = math.exp %210 : vector<2x8xf32>
    %cst_105 = arith.constant dense<0.000000e+00> : vector<2xf32>
    %212 = vector.multi_reduction <add>, %211, %cst_105 [1] : vector<2x8xf32> to vector<2xf32>
    %213 = vector.shape_cast %212 : vector<2xf32> to vector<2x1xf32>
    %214 = vector.broadcast %213 : vector<2x1xf32> to vector<2x8xf32>
    %215 = arith.divf %211, %214 : vector<2x8xf32>
    %cst_106 = arith.constant dense<0.000000e+00> : vector<2x8xf32>
    %216 = tpu.matmul %215, %203, %cst_106 {dimension_numbers = #tpu.dot_dimension_numbers<[1], [0], [0], [1], [0, 0, 1, 1], [], []>} : vector<2x8xf32>, vector<8x8xf32>, vector<2x8xf32> -> vector<2x8xf32>
    %c0_107 = arith.constant 0 : index
    %c8 = arith.constant 8 : index
    %217 = vector.load %arg25[%c0_107, %c8] : memref<2x32xf32, #tpu.memory_space<vmem>>, vector<2x8xf32>
    tpu.vector_store %arg25[%c0_107, %c8], %216 {strides = array<i32>} : memref<2x32xf32, #tpu.memory_space<vmem>>, vector<2x8xf32>,
    %218 = vector.extract_strided_slice %179 {offsets = [0, 16], sizes = [2, 8], strides = [1, 1]} : vector<2x32xf32> to vector<2x8xf32>
    %219 = vector.extract_strided_slice %181 {offsets = [0, 16], sizes = [8, 8], strides = [1, 1]} : vector<8x32xf32> to vector<8x8xf32>
    %220 = vector.extract_strided_slice %183 {offsets = [0, 16], sizes = [8, 8], strides = [1, 1]} : vector<8x32xf32> to vector<8x8xf32>
    %cst_108 = arith.constant dense<0.000000e+00> : vector<2x8xf32>
    %221 = tpu.matmul %218, %219, %cst_108 {dimension_numbers = #tpu.dot_dimension_numbers<[1], [1], [0], [0], [0, 0, 1, 0], [], []>} : vector<2x8xf32>, vector<8x8xf32>, vector<2x8xf32> -> vector<2x8xf32>
    %cst_109 = arith.constant 0.353553385 : f32
    %222 = vector.broadcast %cst_109 : f32 to vector<2x8xf32>
    %223 = arith.mulf %221, %222 : vector<2x8xf32>
    %cst_110 = arith.constant dense<0xFF800000> : vector<2xf32>
    %224 = vector.multi_reduction <maximumf>, %223, %cst_110 [1] : vector<2x8xf32> to vector<2xf32>
    %225 = vector.shape_cast %224 : vector<2xf32> to vector<2x1xf32>
    %226 = vector.broadcast %225 : vector<2x1xf32> to vector<2x8xf32>
    %227 = arith.subf %223, %226 : vector<2x8xf32>
    %228 = math.exp %227 : vector<2x8xf32>
    %cst_111 = arith.constant dense<0.000000e+00> : vector<2xf32>
    %229 = vector.multi_reduction <add>, %228, %cst_111 [1] : vector<2x8xf32> to vector<2xf32>
    %230 = vector.shape_cast %229 : vector<2xf32> to vector<2x1xf32>
    %231 = vector.broadcast %230 : vector<2x1xf32> to vector<2x8xf32>
    %232 = arith.divf %228, %231 : vector<2x8xf32>
    %cst_112 = arith.constant dense<0.000000e+00> : vector<2x8xf32>
    %233 = tpu.matmul %232, %220, %cst_112 {dimension_numbers = #tpu.dot_dimension_numbers<[1], [0], [0], [1], [0, 0, 1, 1], [], []>} : vector<2x8xf32>, vector<8x8xf32>, vector<2x8xf32> -> vector<2x8xf32>
    %c0_113 = arith.constant 0 : index
    %c16 = arith.constant 16 : index
    %234 = vector.load %arg25[%c0_113, %c16] : memref<2x32xf32, #tpu.memory_space<vmem>>, vector<2x8xf32>
    tpu.vector_store %arg25[%c0_113, %c16], %233 {strides = array<i32>} : memref<2x32xf32, #tpu.memory_space<vmem>>, vector<2x8xf32>,
    %235 = vector.extract_strided_slice %179 {offsets = [0, 24], sizes = [2, 8], strides = [1, 1]} : vector<2x32xf32> to vector<2x8xf32>
    %236 = vector.extract_strided_slice %181 {offsets = [0, 24], sizes = [8, 8], strides = [1, 1]} : vector<8x32xf32> to vector<8x8xf32>
    %237 = vector.extract_strided_slice %183 {offsets = [0, 24], sizes = [8, 8], strides = [1, 1]} : vector<8x32xf32> to vector<8x8xf32>
    %cst_114 = arith.constant dense<0.000000e+00> : vector<2x8xf32>
    %238 = tpu.matmul %235, %236, %cst_114 {dimension_numbers = #tpu.dot_dimension_numbers<[1], [1], [0], [0], [0, 0, 1, 0], [], []>} : vector<2x8xf32>, vector<8x8xf32>, vector<2x8xf32> -> vector<2x8xf32>
    %cst_115 = arith.constant 0.353553385 : f32
    %239 = vector.broadcast %cst_115 : f32 to vector<2x8xf32>
    %240 = arith.mulf %238, %239 : vector<2x8xf32>
    %cst_116 = arith.constant dense<0xFF800000> : vector<2xf32>
    %241 = vector.multi_reduction <maximumf>, %240, %cst_116 [1] : vector<2x8xf32> to vector<2xf32>
    %242 = vector.shape_cast %241 : vector<2xf32> to vector<2x1xf32>
    %243 = vector.broadcast %242 : vector<2x1xf32> to vector<2x8xf32>
    %244 = arith.subf %240, %243 : vector<2x8xf32>
    %245 = math.exp %244 : vector<2x8xf32>
    %cst_117 = arith.constant dense<0.000000e+00> : vector<2xf32>
    %246 = vector.multi_reduction <add>, %245, %cst_117 [1] : vector<2x8xf32> to vector<2xf32>
    %247 = vector.shape_cast %246 : vector<2xf32> to vector<2x1xf32>
    %248 = vector.broadcast %247 : vector<2x1xf32> to vector<2x8xf32>
    %249 = arith.divf %245, %248 : vector<2x8xf32>
    %cst_118 = arith.constant dense<0.000000e+00> : vector<2x8xf32>
    %250 = tpu.matmul %249, %237, %cst_118 {dimension_numbers = #tpu.dot_dimension_numbers<[1], [0], [0], [1], [0, 0, 1, 1], [], []>} : vector<2x8xf32>, vector<8x8xf32>, vector<2x8xf32> -> vector<2x8xf32>
    %c0_119 = arith.constant 0 : index
    %c24 = arith.constant 24 : index
    %251 = vector.load %arg25[%c0_119, %c24] : memref<2x32xf32, #tpu.memory_space<vmem>>, vector<2x8xf32>
    tpu.vector_store %arg25[%c0_119, %c24], %250 {strides = array<i32>} : memref<2x32xf32, #tpu.memory_space<vmem>>, vector<2x8xf32>,
    return
  }
  func.func @transform_0(%arg0: i32) -> (i32, i32) {
    %c0_i32 = arith.constant 0 : i32
    %c0_i32_0 = arith.constant 0 : i32
    %c0_i32_1 = arith.constant 0 : i32
    return %c0_i32, %c0_i32_0 : i32, i32
  }
  func.func @transform_1(%arg0: i32) -> (i32, i32) {
    %c0_i32 = arith.constant 0 : i32
    %c0_i32_0 = arith.constant 0 : i32
    %c0_i32_1 = arith.constant 0 : i32
    return %c0_i32, %c0_i32_0 : i32, i32
  }
  func.func @transform_2(%arg0: i32) -> (i32, i32) {
    %c0_i32 = arith.constant 0 : i32
    %c0_i32_0 = arith.constant 0 : i32
    %c0_i32_1 = arith.constant 0 : i32
    return %c0_i32, %c0_i32_0 : i32, i32
  }
  func.func @transform_3(%arg0: i32) -> (i32, i32) {
    %c0_i32 = arith.constant 0 : i32
    %c0_i32_0 = arith.constant 0 : i32
    %c0_i32_1 = arith.constant 0 : i32
    return %c0_i32, %c0_i32_0 : i32, i32
  }
  func.func @transform_4(%arg0: i32) -> (i32, i32) {
    %c0_i32 = arith.constant 0 : i32
    %c0_i32_0 = arith.constant 0 : i32
    %c0_i32_1 = arith.constant 0 : i32
    return %c0_i32, %c0_i32_0 : i32, i32
  }
  func.func @transform_5(%arg0: i32) -> (i32, i32) {
    %c0_i32 = arith.constant 0 : i32
    %c0_i32_0 = arith.constant 0 : i32
    %c0_i32_1 = arith.constant 0 : i32
    return %c0_i32, %c0_i32_0 : i32, i32
  }
  func.func @transform_6(%arg0: i32) -> (i32, i32) {
    %c0_i32 = arith.constant 0 : i32
    %c0_i32_0 = arith.constant 0 : i32
    %c0_i32_1 = arith.constant 0 : i32
    return %c0_i32, %c0_i32_0 : i32, i32
  }
  func.func @transform_7(%arg0: i32) -> (i32, i32) {
    %c0_i32 = arith.constant 0 : i32
    %c0_i32_0 = arith.constant 0 : i32
    %c0_i32_1 = arith.constant 0 : i32
    return %c0_i32, %c0_i32_0 : i32, i32
  }
  func.func @transform_8(%arg0: i32) -> (i32, i32) {
    %c0_i32 = arith.constant 0 : i32
    %c0_i32_0 = arith.constant 0 : i32
    %c0_i32_1 = arith.constant 0 : i32
    return %c0_i32, %c0_i32_0 : i32, i32
  }
  func.func @transform_9(%arg0: i32) -> (i32, i32) {
    %c0_i32 = arith.constant 0 : i32
    %c0_i32_0 = arith.constant 0 : i32
    %c0_i32_1 = arith.constant 0 : i32
    return %c0_i32, %c0_i32_0 : i32, i32
  }
  func.func @transform_10(%arg0: i32) -> (i32, i32) {
    %c0_i32 = arith.constant 0 : i32
    %c0_i32_0 = arith.constant 0 : i32
    %c0_i32_1 = arith.constant 0 : i32
    return %c0_i32, %c0_i32_0 : i32, i32
  }
  func.func @transform_11(%arg0: i32) -> (i32, i32) {
    %c0_i32 = arith.constant 0 : i32
    %c0_i32_0 = arith.constant 0 : i32
    %c0_i32_1 = arith.constant 0 : i32
    return %c0_i32, %c0_i32_0 : i32, i32
  }
  func.func @transform_12(%arg0: i32) -> (i32, i32) {
    %c0_i32 = arith.constant 0 : i32
    %c0_i32_0 = arith.constant 0 : i32
    %c0_i32_1 = arith.constant 0 : i32
    return %c0_i32, %c0_i32_0 : i32, i32
  }
  func.func @transform_13(%arg0: i32) -> (i32, i32) {
    %c0_i32 = arith.constant 0 : i32
    %c0_i32_0 = arith.constant 0 : i32
    %c0_i32_1 = arith.constant 0 : i32
    return %c0_i32, %c0_i32_0 : i32, i32
  }
  func.func @transform_14(%arg0: i32) -> (i32, i32) {
    %c0_i32 = arith.constant 0 : i32
    %c0_i32_0 = arith.constant 0 : i32
    %c0_i32_1 = arith.constant 0 : i32
    return %c0_i32, %c0_i32_0 : i32, i32
  }
  func.func @transform_15(%arg0: i32) -> (i32, i32) {
    %c0_i32 = arith.constant 0 : i32
    %c0_i32_0 = arith.constant 0 : i32
    %c0_i32_1 = arith.constant 0 : i32
    return %c0_i32, %c0_i32_0 : i32, i32
  }
  func.func @transform_16(%arg0: i32) -> (i32, i32) {
    %c0_i32 = arith.constant 0 : i32
    %c0_i32_0 = arith.constant 0 : i32
    %c0_i32_1 = arith.constant 0 : i32
    return %c0_i32, %c0_i32_0 : i32, i32
  }
  func.func @transform_17(%arg0: i32) -> (i32, i32) {
    %c0_i32 = arith.constant 0 : i32
    %c0_i32_0 = arith.constant 0 : i32
    %c0_i32_1 = arith.constant 0 : i32
    return %c0_i32, %c0_i32_0 : i32, i32
  }
  func.func @transform_18(%arg0: i32) -> (i32, i32) {
    %c0_i32 = arith.constant 0 : i32
    %c0_i32_0 = arith.constant 0 : i32
    %c0_i32_1 = arith.constant 0 : i32
    return %c0_i32, %c0_i32_0 : i32, i32
  }
  func.func @transform_19(%arg0: i32) -> (i32, i32) {
    %c0_i32 = arith.constant 0 : i32
    %c0_i32_0 = arith.constant 0 : i32
    %c0_i32_1 = arith.constant 0 : i32
    return %c0_i32, %c0_i32_0 : i32, i32
  }
  func.func @transform_20(%arg0: i32) -> (i32, i32) {
    %c0_i32 = arith.constant 0 : i32
    %c0_i32_0 = arith.constant 0 : i32
    %c0_i32_1 = arith.constant 0 : i32
    return %c0_i32, %c0_i32_0 : i32, i32
  }
  func.func @transform_21(%arg0: i32) -> (i32, i32) {
    %c0_i32 = arith.constant 0 : i32
    %c0_i32_0 = arith.constant 0 : i32
    %c0_i32_1 = arith.constant 0 : i32
    return %c0_i32, %c0_i32_0 : i32, i32
  }
  func.func @transform_22(%arg0: i32) -> (i32, i32) {
    %c0_i32 = arith.constant 0 : i32
    %c0_i32_0 = arith.constant 0 : i32
    %c0_i32_1 = arith.constant 0 : i32
    return %c0_i32, %c0_i32_0 : i32, i32
  }
  func.func @transform_23(%arg0: i32) -> (i32, i32) {
    %c0_i32 = arith.constant 0 : i32
    %c0_i32_0 = arith.constant 0 : i32
    %c0_i32_1 = arith.constant 0 : i32
    return %c0_i32, %c0_i32_0 : i32, i32
  }
  func.func @transform_24(%arg0: i32) -> (i32, i32) {
    %c0_i32 = arith.constant 0 : i32
    %c0_i32_0 = arith.constant 0 : i32
    %c0_i32_1 = arith.constant 0 : i32
    return %c0_i32, %c0_i32_0 : i32, i32
  }
}

</mosaic_0001>

<llo_original>
// kernel: gst_forward.1
$region0: #{gst_forward.1}
  #allocation0 [shape = 'u32[]', space=smem, size = 0x4, offset = 0x4, fixed_abs, tag = 'smem constant byte address 0x4 - core index']
  #allocation1 [shape = 'u32[72,128]{1,0:T(1,128)}', space=vmem, size = 0x9000, scoped, tag = 'internal scratch']
  %s0 = inlined_call_operand.vmem [shape: f32[2,256], index: 0, kind: input, shape index: {}]
  %s1 = inlined_call_operand.hbm [shape: f32[256,256], index: 1, kind: input, shape index: {}]
  %s2 = inlined_call_operand.vmem [shape: f32[256,4], index: 2, kind: input, shape index: {}]
  %s3 = inlined_call_operand.vmem [shape: f32[4,256], index: 3, kind: input, shape index: {}]
  %s4 = inlined_call_operand.vmem [shape: f32[1,4], index: 4, kind: input, shape index: {}]
  %s5 = inlined_call_operand.vmem [shape: f32[1,4], index: 5, kind: input, shape index: {}]
  %s6 = inlined_call_operand.vmem [shape: f32[256,128], index: 6, kind: input, shape index: {}]
  %s7 = inlined_call_operand.vmem [shape: f32[128,8], index: 7, kind: input, shape index: {}]
  %s8 = inlined_call_operand.vmem [shape: f32[8,128], index: 8, kind: input, shape index: {}]
  %s9 = inlined_call_operand.vmem [shape: f32[1,8], index: 9, kind: input, shape index: {}]
  %s10 = inlined_call_operand.vmem [shape: f32[1,8], index: 10, kind: input, shape index: {}]
  %s11 = inlined_call_operand.vmem [shape: f32[128,64], index: 11, kind: input, shape index: {}]
  %s12 = inlined_call_operand.vmem [shape: f32[64,16], index: 12, kind: input, shape index: {}]
  %s13 = inlined_call_operand.vmem [shape: f32[16,64], index: 13, kind: input, shape index: {}]
  %s14 = inlined_call_operand.vmem [shape: f32[1,16], index: 14, kind: input, shape index: {}]
  %s15 = inlined_call_operand.vmem [shape: f32[1,16], index: 15, kind: input, shape index: {}]
  %s16 = inlined_call_operand.vmem [shape: f32[64,192], index: 16, kind: input, shape index: {}]
  %s17 = inlined_call_operand.vmem [shape: f32[1,96], index: 17, kind: input, shape index: {}]
  %s18 = inlined_call_operand.vmem [shape: f32[32,96], index: 18, kind: input, shape index: {}]
  %s19 = inlined_call_operand.vmem [shape: f32[1,96], index: 19, kind: input, shape index: {}]
  %s20 = inlined_call_operand.vmem [shape: f32[8,8], index: 20, kind: input, shape index: {}]
  %s21 = inlined_call_operand.vmem [shape: f32[32,32], index: 21, kind: input, shape index: {}]
  %s22 = inlined_call_operand.vmem [shape: f32[8,32], index: 22, kind: input, shape index: {}]
  %s23 = inlined_call_operand.vmem [shape: f32[8,32], index: 23, kind: input, shape index: {}]
  %s24 = inlined_call_operand.hbm [shape: f32[2,32], index: 24, kind: output, shape index: {}]
  %s25 = sld [smem:[#allocation0]]
  $region110: #{gst_forward.1} parent=0
    _
  %s27 = ssub.s32 1, %s25
  %s28 = scalar_select 0, %s27, %s25
  $region1: #{gst_forward.1} parent=0
    #allocation2 [shape = 'u8[262144]{0}', space=vmem, size = 0x40000, scoped, tag = 'input window, operand 1, single buffered']
    #allocation3 [shape = 's32[1]{0}', space=sflag, size = 0x4, scoped, tag = 'scoped memory for gst_forward.1']
    #allocation4 [shape = 's32[1]{0}', space=sflag, size = 0x4, scoped, tag = 'scoped memory for gst_forward.1']
    #allocation5 [shape = 'u8[1024]{0}', space=vmem, size = 0x400, scoped, tag = 'output window, operand 0, single buffered']
    %29 = vsyncpa [#allocation3], 0
    %30 = vsyncpa [#allocation4], 0
    // Predicated region
    $region2: #{gst_forward.1} parent=1 // pred_check
      _
    $region3: #{gst_forward.1} parent=1 // pred_check_branch
      %32 = sbr.rel (0) target = $region5
    $region4: #{gst_forward.1} parent=1 // pred_region
      _
    $region5: #{gst_forward.1} parent=1 // pred_fallthru
      _
    // Predicated region
    $region6: #{gst_forward.1} parent=1 // pred_check
      _
    $region7: #{gst_forward.1} parent=1 // pred_check_branch
      %34 = sbr.rel (0) target = $region9
    $region8: #{gst_forward.1} parent=1 // pred_region
      %36 = vsyncadd [#allocation3], 0
      %s37 = sshll.u32 %s1, 4
      %s38 = int_to_ptr.hbm [resolvable:$true] %s37
      %s39 = sshll.u32 [#allocation2], 4
      %s40 = int_to_ptr.vmem [resolvable:$true] %s39
      %45 = dma.hbm_to_vmem [thread:$0]  %s38, 8192, %s40, [#allocation3], 256, 256, 16
    $region9: #{gst_forward.1} parent=1 // pred_fallthru
      _
    // Predicated region
    $region10: #{gst_forward.1} parent=1 // pred_check
      _
    $region11: #{gst_forward.1} parent=1 // pred_check_branch
      %47 = sbr.rel (0) target = $region13
    $region12: #{gst_forward.1} parent=1 // pred_region
      _
    $region13: #{gst_forward.1} parent=1 // pred_fallthru
      _
    // Predicated region
    $region14: #{gst_forward.1} parent=1 // pred_check
      _
    $region15: #{gst_forward.1} parent=1 // pred_check_branch
      %49 = sbr.rel (0) target = $region17
    $region16: #{gst_forward.1} parent=1 // pred_region
      _
    $region17: #{gst_forward.1} parent=1 // pred_fallthru
      _
    // Predicated region
    $region18: #{gst_forward.1} parent=1 // pred_check
      _
    $region19: #{gst_forward.1} parent=1 // pred_check_branch
      %51 = sbr.rel (0) target = $region21
    $region20: #{gst_forward.1} parent=1 // pred_region
      _
    $region21: #{gst_forward.1} parent=1 // pred_fallthru
      _
    // Predicated region
    $region22: #{gst_forward.1} parent=1 // pred_check
      _
    $region23: #{gst_forward.1} parent=1 // pred_check_branch
      %53 = sbr.rel (0) target = $region25
    $region24: #{gst_forward.1} parent=1 // pred_region
      _
    $region25: #{gst_forward.1} parent=1 // pred_fallthru
      _
    // Predicated region
    $region26: #{gst_forward.1} parent=1 // pred_check
      _
    $region27: #{gst_forward.1} parent=1 // pred_check_branch
      %55 = sbr.rel (0) target = $region29
    $region28: #{gst_forward.1} parent=1 // pred_region
      _
    $region29: #{gst_forward.1} parent=1 // pred_fallthru
      _
    // Predicated region
    $region30: #{gst_forward.1} parent=1 // pred_check
      _
    $region31: #{gst_forward.1} parent=1 // pred_check_branch
      %57 = sbr.rel (0) target = $region33
    $region32: #{gst_forward.1} parent=1 // pred_region
      _
    $region33: #{gst_forward.1} parent=1 // pred_fallthru
      _
    // Predicated region
    $region34: #{gst_forward.1} parent=1 // pred_check
      _
    $region35: #{gst_forward.1} parent=1 // pred_check_branch
      %59 = sbr.rel (0) target = $region37
    $region36: #{gst_forward.1} parent=1 // pred_region
      _
    $region37: #{gst_forward.1} parent=1 // pred_fallthru
      _
    // Predicated region
    $region38: #{gst_forward.1} parent=1 // pred_check
      _
    $region39: #{gst_forward.1} parent=1 // pred_check_branch
      %61 = sbr.rel (0) target = $region41
    $region40: #{gst_forward.1} parent=1 // pred_region
      _
    $region41: #{gst_forward.1} parent=1 // pred_fallthru
      _
    // Predicated region
    $region42: #{gst_forward.1} parent=1 // pred_check
      _
    $region43: #{gst_forward.1} parent=1 // pred_check_branch
      %63 = sbr.rel (0) target = $region45
    $region44: #{gst_forward.1} parent=1 // pred_region
      _
    $region45: #{gst_forward.1} parent=1 // pred_fallthru
      _
    // Predicated region
    $region46: #{gst_forward.1} parent=1 // pred_check
      _
    $region47: #{gst_forward.1} parent=1 // pred_check_branch
      %65 = sbr.rel (0) target = $region49
    $region48: #{gst_forward.1} parent=1 // pred_region
      _
    $region49: #{gst_forward.1} parent=1 // pred_fallthru
      _
    // Predicated region
    $region50: #{gst_forward.1} parent=1 // pred_check
      _
    $region51: #{gst_forward.1} parent=1 // pred_check_branch
      %67 = sbr.rel (0) target = $region53
    $region52: #{gst_forward.1} parent=1 // pred_region
      _
    $region53: #{gst_forward.1} parent=1 // pred_fallthru
      _
    // Predicated region
    $region54: #{gst_forward.1} parent=1 // pred_check
      _
    $region55: #{gst_forward.1} parent=1 // pred_check_branch
      %69 = sbr.rel (0) target = $region57
    $region56: #{gst_forward.1} parent=1 // pred_region
      _
    $region57: #{gst_forward.1} parent=1 // pred_fallthru
      _
    // Predicated region
    $region58: #{gst_forward.1} parent=1 // pred_check
      _
    $region59: #{gst_forward.1} parent=1 // pred_check_branch
      %71 = sbr.rel (0) target = $region61
    $region60: #{gst_forward.1} parent=1 // pred_region
      _
    $region61: #{gst_forward.1} parent=1 // pred_fallthru
      _
    // Predicated region
    $region62: #{gst_forward.1} parent=1 // pred_check
      _
    $region63: #{gst_forward.1} parent=1 // pred_check_branch
      %73 = sbr.rel (0) target = $region65
    $region64: #{gst_forward.1} parent=1 // pred_region
      _
    $region65: #{gst_forward.1} parent=1 // pred_fallthru
      _
    // Predicated region
    $region66: #{gst_forward.1} parent=1 // pred_check
      _
    $region67: #{gst_forward.1} parent=1 // pred_check_branch
      %75 = sbr.rel (0) target = $region69
    $region68: #{gst_forward.1} parent=1 // pred_region
      _
    $region69: #{gst_forward.1} parent=1 // pred_fallthru
      _
    // Predicated region
    $region70: #{gst_forward.1} parent=1 // pred_check
      _
    $region71: #{gst_forward.1} parent=1 // pred_check_branch
      %77 = sbr.rel (0) target = $region73
    $region72: #{gst_forward.1} parent=1 // pred_region
      _
    $region73: #{gst_forward.1} parent=1 // pred_fallthru
      _
    // Predicated region
    $region74: #{gst_forward.1} parent=1 // pred_check
      _
    $region75: #{gst_forward.1} parent=1 // pred_check_branch
      %79 = sbr.rel (0) target = $region77
    $region76: #{gst_forward.1} parent=1 // pred_region
      _
    $region77: #{gst_forward.1} parent=1 // pred_fallthru
      _
    // Predicated region
    $region78: #{gst_forward.1} parent=1 // pred_check
      _
    $region79: #{gst_forward.1} parent=1 // pred_check_branch
      %81 = sbr.rel (0) target = $region81
    $region80: #{gst_forward.1} parent=1 // pred_region
      _
    $region81: #{gst_forward.1} parent=1 // pred_fallthru
      _
    // Predicated region
    $region82: #{gst_forward.1} parent=1 // pred_check
      _
    $region83: #{gst_forward.1} parent=1 // pred_check_branch
      %83 = sbr.rel (0) target = $region85
    $region84: #{gst_forward.1} parent=1 // pred_region
      _
    $region85: #{gst_forward.1} parent=1 // pred_fallthru
      _
    // Predicated region
    $region86: #{gst_forward.1} parent=1 // pred_check
      _
    $region87: #{gst_forward.1} parent=1 // pred_check_branch
      %85 = sbr.rel (0) target = $region89
    $region88: #{gst_forward.1} parent=1 // pred_region
      _
    $region89: #{gst_forward.1} parent=1 // pred_fallthru
      _
    // Predicated region
    $region90: #{gst_forward.1} parent=1 // pred_check
      _
    $region91: #{gst_forward.1} parent=1 // pred_check_branch
      %87 = sbr.rel (0) target = $region93
    $region92: #{gst_forward.1} parent=1 // pred_region
      _
    $region93: #{gst_forward.1} parent=1 // pred_fallthru
      _
    // Predicated region
    $region94: #{gst_forward.1} parent=1 // pred_check
      _
    $region95: #{gst_forward.1} parent=1 // pred_check_branch
      %89 = sbr.rel (0) target = $region97
    $region96: #{gst_forward.1} parent=1 // pred_region
      _
    $region97: #{gst_forward.1} parent=1 // pred_fallthru
      _
    // Predicated region
    $region98: #{gst_forward.1} parent=1 // pred_check
      _
    $region99: #{gst_forward.1} parent=1 // pred_check_branch
      %91 = sbr.rel (0) target = $region101
    $region100: #{gst_forward.1} parent=1 // pred_region
      %93 = dma.done [#allocation3], 8192
    $region101: #{gst_forward.1} parent=1 // pred_fallthru
      _
    %v94 = vld [vmem:[%s0] sm:$0xf]
    %v95 = vld [vmem:[#allocation2] sm:$0xff]
    %v96 = vld [vmem:[#allocation2 + $0x8] sm:$0xff]
    %v97 = vld [vmem:[#allocation2 + $0x10] sm:$0xff]
    %v98 = vld [vmem:[#allocation2 + $0x18] sm:$0xff]
    %v99 = vld [vmem:[#allocation2 + $0x20] sm:$0xff]
    %v100 = vld [vmem:[#allocation2 + $0x28] sm:$0xff]
    %v101 = vld [vmem:[#allocation2 + $0x30] sm:$0xff]
    %v102 = vld [vmem:[#allocation2 + $0x38] sm:$0xff]
    %v103 = vld [vmem:[#allocation2 + $0x40] sm:$0xff]
    %v104 = vld [vmem:[#allocation2 + $0x48] sm:$0xff]
    %v105 = vld [vmem:[#allocation2 + $0x50] sm:$0xff]
    %v106 = vld [vmem:[#allocation2 + $0x58] sm:$0xff]
    %v107 = vld [vmem:[#allocation2 + $0x60] sm:$0xff]
    %v108 = vld [vmem:[#allocation2 + $0x68] sm:$0xff]
    %v109 = vld [vmem:[#allocation2 + $0x70] sm:$0xff]
    %v110 = vld [vmem:[#allocation2 + $0x78] sm:$0xff]
    %v111 = vld [vmem:[#allocation2 + $0x80] sm:$0xff]
    %v112 = vld [vmem:[#allocation2 + $0x88] sm:$0xff]
    %v113 = vld [vmem:[#allocation2 + $0x90] sm:$0xff]
    %v114 = vld [vmem:[#allocation2 + $0x98] sm:$0xff]
    %v115 = vld [vmem:[#allocation2 + $0xa0] sm:$0xff]
    %v116 = vld [vmem:[#allocation2 + $0xa8] sm:$0xff]
    %v117 = vld [vmem:[#allocation2 + $0xb0] sm:$0xff]
    %v118 = vld [vmem:[#allocation2 + $0xb8] sm:$0xff]
    %v119 = vld [vmem:[#allocation2 + $0xc0] sm:$0xff]
    %v120 = vld [vmem:[#allocation2 + $0xc8] sm:$0xff]
    %v121 = vld [vmem:[#allocation2 + $0xd0] sm:$0xff]
    %v122 = vld [vmem:[#allocation2 + $0xd8] sm:$0xff]
    %v123 = vld [vmem:[#allocation2 + $0xe0] sm:$0xff]
    %v124 = vld [vmem:[#allocation2 + $0xe8] sm:$0xff]
    %v125 = vld [vmem:[#allocation2 + $0xf0] sm:$0xff]
    %v126 = vld [vmem:[#allocation2 + $0xf8] sm:$0xff]
    %v127 = vld [vmem:[#allocation2 + $0x100] sm:$0xff]
    %v128 = vld [vmem:[#allocation2 + $0x108] sm:$0xff]
    %v129 = vld [vmem:[#allocation2 + $0x110] sm:$0xff]
    %v130 = vld [vmem:[#allocation2 + $0x118] sm:$0xff]
    %v131 = vld [vmem:[#allocation2 + $0x120] sm:$0xff]
    %v132 = vld [vmem:[#allocation2 + $0x128] sm:$0xff]
    %v133 = vld [vmem:[#allocation2 + $0x130] sm:$0xff]
    %v134 = vld [vmem:[#allocation2 + $0x138] sm:$0xff]
    %v135 = vld [vmem:[#allocation2 + $0x140] sm:$0xff]
    %v136 = vld [vmem:[#allocation2 + $0x148] sm:$0xff]
    %v137 = vld [vmem:[#allocation2 + $0x150] sm:$0xff]
    %v138 = vld [vmem:[#allocation2 + $0x158] sm:$0xff]
    %v139 = vld [vmem:[#allocation2 + $0x160] sm:$0xff]
    %v140 = vld [vmem:[#allocation2 + $0x168] sm:$0xff]
    %v141 = vld [vmem:[#allocation2 + $0x170] sm:$0xff]
    %v142 = vld [vmem:[#allocation2 + $0x178] sm:$0xff]
    %v143 = vld [vmem:[#allocation2 + $0x180] sm:$0xff]
    %v144 = vld [vmem:[#allocation2 + $0x188] sm:$0xff]
    %v145 = vld [vmem:[#allocation2 + $0x190] sm:$0xff]
    %v146 = vld [vmem:[#allocation2 + $0x198] sm:$0xff]
    %v147 = vld [vmem:[#allocation2 + $0x1a0] sm:$0xff]
    %v148 = vld [vmem:[#allocation2 + $0x1a8] sm:$0xff]
    %v149 = vld [vmem:[#allocation2 + $0x1b0] sm:$0xff]
    %v150 = vld [vmem:[#allocation2 + $0x1b8] sm:$0xff]
    %v151 = vld [vmem:[#allocation2 + $0x1c0] sm:$0xff]
    %v152 = vld [vmem:[#allocation2 + $0x1c8] sm:$0xff]
    %v153 = vld [vmem:[#allocation2 + $0x1d0] sm:$0xff]
    %v154 = vld [vmem:[#allocation2 + $0x1d8] sm:$0xff]
    %v155 = vld [vmem:[#allocation2 + $0x1e0] sm:$0xff]
    %v156 = vld [vmem:[#allocation2 + $0x1e8] sm:$0xff]
    %v157 = vld [vmem:[#allocation2 + $0x1f0] sm:$0xff]
    %v158 = vld [vmem:[#allocation2 + $0x1f8] sm:$0xff]
    %v159 = vld [vmem:[%s2] sm:$0xff]
    %v160 = vld [vmem:[%s2 + $0x8] sm:$0xff]
    %v161 = vld [vmem:[%s2 + $0x10] sm:$0xff]
    %v162 = vld [vmem:[%s2 + $0x18] sm:$0xff]
    %v163 = vld [vmem:[%s2 + $0x20] sm:$0xff]
    %v164 = vld [vmem:[%s2 + $0x28] sm:$0xff]
    %v165 = vld [vmem:[%s2 + $0x30] sm:$0xff]
    %v166 = vld [vmem:[%s2 + $0x38] sm:$0xff]
    %v167 = vld [vmem:[%s2 + $0x40] sm:$0xff]
    %v168 = vld [vmem:[%s2 + $0x48] sm:$0xff]
    %v169 = vld [vmem:[%s2 + $0x50] sm:$0xff]
    %v170 = vld [vmem:[%s2 + $0x58] sm:$0xff]
    %v171 = vld [vmem:[%s2 + $0x60] sm:$0xff]
    %v172 = vld [vmem:[%s2 + $0x68] sm:$0xff]
    %v173 = vld [vmem:[%s2 + $0x70] sm:$0xff]
    %v174 = vld [vmem:[%s2 + $0x78] sm:$0xff]
    %v175 = vld [vmem:[%s2 + $0x80] sm:$0xff]
    %v176 = vld [vmem:[%s2 + $0x88] sm:$0xff]
    %v177 = vld [vmem:[%s2 + $0x90] sm:$0xff]
    %v178 = vld [vmem:[%s2 + $0x98] sm:$0xff]
    %v179 = vld [vmem:[%s2 + $0xa0] sm:$0xff]
    %v180 = vld [vmem:[%s2 + $0xa8] sm:$0xff]
    %v181 = vld [vmem:[%s2 + $0xb0] sm:$0xff]
    %v182 = vld [vmem:[%s2 + $0xb8] sm:$0xff]
    %v183 = vld [vmem:[%s2 + $0xc0] sm:$0xff]
    %v184 = vld [vmem:[%s2 + $0xc8] sm:$0xff]
    %v185 = vld [vmem:[%s2 + $0xd0] sm:$0xff]
    %v186 = vld [vmem:[%s2 + $0xd8] sm:$0xff]
    %v187 = vld [vmem:[%s2 + $0xe0] sm:$0xff]
    %v188 = vld [vmem:[%s2 + $0xe8] sm:$0xff]
    %v189 = vld [vmem:[%s2 + $0xf0] sm:$0xff]
    %v190 = vld [vmem:[%s2 + $0xf8] sm:$0xff]
    %v191 = vld [vmem:[%s3] sm:$0xff]
    %v192 = vld [vmem:[%s4] sm:$0x1]
    %v193 = vld [vmem:[%s5] sm:$0x1]
    %195 = vst [vmem:[#allocation1] ss:$4 sm:$0xff] %v94
    %v196 = vld.sshfl [vmem:[#allocation1] sm:$0xff pattern:$0x73625140]
    %v197 = vld.sshfl [vmem:[#allocation1 + $0x8] sm:$0xff pattern:$0x73625140]
    %200 = vmatpush.msra.mxu0 %v125
    %201 = vmatpush.msra.mxu0 %v123
    %202 = vmatpush.msra.mxu0 %v121
    %203 = vmatpush.msra.mxu0 %v119
    %204 = vmatpush.msra.mxu0 %v117
    %205 = vmatpush.msra.mxu0 %v115
    %206 = vmatpush.msra.mxu0 %v113
    %207 = vmatpush.msra.mxu0 %v111
    %208 = vmatpush.msra.mxu0 %v109
    %209 = vmatpush.msra.mxu0 %v107
    %210 = vmatpush.msra.mxu0 %v105
    %211 = vmatpush.msra.mxu0 %v103
    %212 = vmatpush.msra.mxu0 %v101
    %213 = vmatpush.msra.mxu0 %v99
    %214 = vmatpush.msra.mxu0 %v97
    %215 = vmatpush.msra.mxu0 %v95
    %216 = vmatmul.f32.gmra.mxu0 %v196
    %v217 = vpop.f32.mrf.mxu0
    %v218 = vadd.f32 0.0, %v217
    %219 = vdwg.mxu0
    %220 = vmatpush.msra.mxu0 %v157
    %221 = vmatpush.msra.mxu0 %v155
    %222 = vmatpush.msra.mxu0 %v153
    %223 = vmatpush.msra.mxu0 %v151
    %224 = vmatpush.msra.mxu0 %v149
    %225 = vmatpush.msra.mxu0 %v147
    %226 = vmatpush.msra.mxu0 %v145
    %227 = vmatpush.msra.mxu0 %v143
    %228 = vmatpush.msra.mxu0 %v141
    %229 = vmatpush.msra.mxu0 %v139
    %230 = vmatpush.msra.mxu0 %v137
    %231 = vmatpush.msra.mxu0 %v135
    %232 = vmatpush.msra.mxu0 %v133
    %233 = vmatpush.msra.mxu0 %v131
    %234 = vmatpush.msra.mxu0 %v129
    %235 = vmatpush.msra.mxu0 %v127
    %236 = vmatmul.f32.gmra.mxu0 %v197
    %v237 = vpop.f32.mrf.mxu0
    %v238 = vadd.f32 %v218, %v237
    %239 = vdwg.mxu0
    %240 = vmatpush.msra.mxu0 %v126
    %241 = vmatpush.msra.mxu0 %v124
    %242 = vmatpush.msra.mxu0 %v122
    %243 = vmatpush.msra.mxu0 %v120
    %244 = vmatpush.msra.mxu0 %v118
    %245 = vmatpush.msra.mxu0 %v116
    %246 = vmatpush.msra.mxu0 %v114
    %247 = vmatpush.msra.mxu0 %v112
    %248 = vmatpush.msra.mxu0 %v110
    %249 = vmatpush.msra.mxu0 %v108
    %250 = vmatpush.msra.mxu0 %v106
    %251 = vmatpush.msra.mxu0 %v104
    %252 = vmatpush.msra.mxu0 %v102
    %253 = vmatpush.msra.mxu0 %v100
    %254 = vmatpush.msra.mxu0 %v98
    %255 = vmatpush.msra.mxu0 %v96
    %256 = vmatmul.f32.gmra.mxu0 %v196
    %v257 = vpop.f32.mrf.mxu0
    %v258 = vadd.f32 0.0, %v257
    %259 = vdwg.mxu0
    %260 = vmatpush.msra.mxu0 %v158
    %261 = vmatpush.msra.mxu0 %v156
    %262 = vmatpush.msra.mxu0 %v154
    %263 = vmatpush.msra.mxu0 %v152
    %264 = vmatpush.msra.mxu0 %v150
    %265 = vmatpush.msra.mxu0 %v148
    %266 = vmatpush.msra.mxu0 %v146
    %267 = vmatpush.msra.mxu0 %v144
    %268 = vmatpush.msra.mxu0 %v142
    %269 = vmatpush.msra.mxu0 %v140
    %270 = vmatpush.msra.mxu0 %v138
    %271 = vmatpush.msra.mxu0 %v136
    %272 = vmatpush.msra.mxu0 %v134
    %273 = vmatpush.msra.mxu0 %v132
    %274 = vmatpush.msra.mxu0 %v130
    %275 = vmatpush.msra.mxu0 %v128
    %276 = vmatmul.f32.gmra.mxu0 %v197
    %v277 = vpop.f32.mrf.mxu0
    %v278 = vadd.f32 %v258, %v277
    %279 = vdwg.mxu0
    %vm280 = vcmask 1041408
    %v281 = vsel %vm280, %v238, 0.0
    %v282 = vrot.slane %v281, 4
    %v283 = vadd.f32 %v281, %v282
    %v284 = vrot.slane %v283, 2
    %v285 = vadd.f32 %v283, %v284
    %v286 = vrot.slane %v285, 1
    %v287 = vadd.f32 %v285, %v286
    %v288 = vsel %vm280, %v278, 0.0
    %v289 = vrot.slane %v288, 4
    %v290 = vadd.f32 %v288, %v289
    %v291 = vrot.slane %v290, 2
    %v292 = vadd.f32 %v290, %v291
    %v293 = vrot.slane %v292, 1
    %v294 = vadd.f32 %v292, %v293
    %295 = vmatpush.msra.mxu0 %v174
    %296 = vmatpush.msra.mxu0 %v173
    %297 = vmatpush.msra.mxu0 %v172
    %298 = vmatpush.msra.mxu0 %v171
    %299 = vmatpush.msra.mxu0 %v170
    %300 = vmatpush.msra.mxu0 %v169
    %301 = vmatpush.msra.mxu0 %v168
    %302 = vmatpush.msra.mxu0 %v167
    %303 = vmatpush.msra.mxu0 %v166
    %304 = vmatpush.msra.mxu0 %v165
    %305 = vmatpush.msra.mxu0 %v164
    %306 = vmatpush.msra.mxu0 %v163
    %307 = vmatpush.msra.mxu0 %v162
    %308 = vmatpush.msra.mxu0 %v161
    %309 = vmatpush.msra.mxu0 %v160
    %310 = vmatpush.msra.mxu0 %v159
    %311 = vmatmul.f32.gmra.mxu0 %v287
    %v312 = vpop.f32.mrf.mxu0
    %v313 = vadd.f32 0.0, %v312
    %314 = vdwg.mxu0
    %315 = vmatpush.msra.mxu0 %v190
    %316 = vmatpush.msra.mxu0 %v189
    %317 = vmatpush.msra.mxu0 %v188
    %318 = vmatpush.msra.mxu0 %v187
    %319 = vmatpush.msra.mxu0 %v186
    %320 = vmatpush.msra.mxu0 %v185
    %321 = vmatpush.msra.mxu0 %v184
    %322 = vmatpush.msra.mxu0 %v183
    %323 = vmatpush.msra.mxu0 %v182
    %324 = vmatpush.msra.mxu0 %v181
    %325 = vmatpush.msra.mxu0 %v180
    %326 = vmatpush.msra.mxu0 %v179
    %327 = vmatpush.msra.mxu0 %v178
    %328 = vmatpush.msra.mxu0 %v177
    %329 = vmatpush.msra.mxu0 %v176
    %330 = vmatpush.msra.mxu0 %v175
    %331 = vmatmul.f32.gmra.mxu0 %v294
    %v332 = vpop.f32.mrf.mxu0
    %v333 = vadd.f32 %v313, %v332
    %334 = vdwg.mxu0
    %v335 = vmul.f32 %v238, %v238
    %v336 = vmul.f32 %v278, %v278
    %v337 = vsel %vm280, %v335, 0.0
    %v338 = vrot.slane %v337, 4
    %v339 = vadd.f32 %v337, %v338
    %v340 = vrot.slane %v339, 2
    %v341 = vadd.f32 %v339, %v340
    %v342 = vrot.slane %v341, 1
    %v343 = vadd.f32 %v341, %v342
    %v344 = vsel %vm280, %v336, 0.0
    %v345 = vrot.slane %v344, 4
    %v346 = vadd.f32 %v344, %v345
    %v347 = vrot.slane %v346, 2
    %v348 = vadd.f32 %v346, %v347
    %v349 = vrot.slane %v348, 1
    %v350 = vadd.f32 %v348, %v349
    %351 = vmatpush.msra.mxu0 %v174
    %352 = vmatpush.msra.mxu0 %v173
    %353 = vmatpush.msra.mxu0 %v172
    %354 = vmatpush.msra.mxu0 %v171
    %355 = vmatpush.msra.mxu0 %v170
    %356 = vmatpush.msra.mxu0 %v169
    %357 = vmatpush.msra.mxu0 %v168
    %358 = vmatpush.msra.mxu0 %v167
    %359 = vmatpush.msra.mxu0 %v166
    %360 = vmatpush.msra.mxu0 %v165
    %361 = vmatpush.msra.mxu0 %v164
    %362 = vmatpush.msra.mxu0 %v163
    %363 = vmatpush.msra.mxu0 %v162
    %364 = vmatpush.msra.mxu0 %v161
    %365 = vmatpush.msra.mxu0 %v160
    %366 = vmatpush.msra.mxu0 %v159
    %367 = vmatmul.f32.gmra.mxu0 %v343
    %v368 = vpop.f32.mrf.mxu0
    %v369 = vadd.f32 0.0, %v368
    %370 = vdwg.mxu0
    %371 = vmatpush.msra.mxu0 %v190
    %372 = vmatpush.msra.mxu0 %v189
    %373 = vmatpush.msra.mxu0 %v188
    %374 = vmatpush.msra.mxu0 %v187
    %375 = vmatpush.msra.mxu0 %v186
    %376 = vmatpush.msra.mxu0 %v185
    %377 = vmatpush.msra.mxu0 %v184
    %378 = vmatpush.msra.mxu0 %v183
    %379 = vmatpush.msra.mxu0 %v182
    %380 = vmatpush.msra.mxu0 %v181
    %381 = vmatpush.msra.mxu0 %v180
    %382 = vmatpush.msra.mxu0 %v179
    %383 = vmatpush.msra.mxu0 %v178
    %384 = vmatpush.msra.mxu0 %v177
    %385 = vmatpush.msra.mxu0 %v176
    %386 = vmatpush.msra.mxu0 %v175
    %387 = vmatmul.f32.gmra.mxu0 %v350
    %v388 = vpop.f32.mrf.mxu0
    %v389 = vadd.f32 %v369, %v388
    %390 = vdwg.mxu0
    %v391 = vmul.f32 %v333, 0.0078125
    %v392 = vmul.f32 %v389, 0.0078125
    %v393 = vmul.f32 %v391, %v391
    %v394 = vsub.f32 %v392, %v393
    %v395 = vmax.f32 %v394, 0.0
    %v396 = vadd.f32 %v395, 1e-05
    %v397 = vrsqrt.pop %v396
    %v398 = vmul.f32 %v397, %v396
    %v399 = vmul.f32 %v398, %v397
    %v400 = vmul.f32 0.5, %v399
    %v401 = vsub.f32 1.5, %v400
    %v402 = vmul.f32 %v397, %v401
    %vm403 = vweird.f32 %v396
    %vm404 = vweird.f32 %v397
    %vm405 = vmor %vm403, %vm404
    %v406 = vsel %vm405, %v397, %v402
    %v407 = vmul.f32 %v192, %v406
    %v408 = vmul.f32 %v391, %v407
    %v409 = vsub.f32 %v193, %v408
    %411 = vst [vmem:[#allocation1] ss:$2 sm:$0xff] %v191
    %v412 = vld.sshfl [vmem:[#allocation1] sm:$0xff pattern:$0x75316420]
    %v413 = vld.sshfl [vmem:[#allocation1 + $0x8] sm:$0xff pattern:$0x75316420]
    %vm414 = vcmask 31744
    %v416 = vsel %vm414, %v407, 0
    %vm418 = vcmask 1043456
    %v419 = vsel %vm418, %v412, 0
    %v421 = vsel %vm418, %v413, 0
    %423 = vmatpush.msra.mxu0 0.0
    %424 = vmatpush.msra.mxu0 0.0
    %425 = vmatpush.msra.mxu0 0.0
    %426 = vmatpush.msra.mxu0 0.0
    %427 = vmatpush.msra.mxu0 0.0
    %428 = vmatpush.msra.mxu0 0.0
    %429 = vmatpush.msra.mxu0 0.0
    %430 = vmatpush.msra.mxu0 0.0
    %431 = vmatpush.msra.mxu0 0.0
    %432 = vmatpush.msra.mxu0 0.0
    %433 = vmatpush.msra.mxu0 0.0
    %434 = vmatpush.msra.mxu0 0.0
    %435 = vmatpush.msra.mxu0 0.0
    %436 = vmatpush.msra.mxu0 0.0
    %437 = vmatpush.msra.mxu0 0.0
    %438 = vmatpush.msra.mxu0 %v419
    %439 = vmatmul.f32.gmra.mxu0 %v416
    %v440 = vpop.f32.mrf.mxu0
    %v441 = vadd.f32 0.0, %v440
    %442 = vdwg.mxu0
    %443 = vmatpush.msra.mxu0 0.0
    %444 = vmatpush.msra.mxu0 0.0
    %445 = vmatpush.msra.mxu0 0.0
    %446 = vmatpush.msra.mxu0 0.0
    %447 = vmatpush.msra.mxu0 0.0
    %448 = vmatpush.msra.mxu0 0.0
    %449 = vmatpush.msra.mxu0 0.0
    %450 = vmatpush.msra.mxu0 0.0
    %451 = vmatpush.msra.mxu0 0.0
    %452 = vmatpush.msra.mxu0 0.0
    %453 = vmatpush.msra.mxu0 0.0
    %454 = vmatpush.msra.mxu0 0.0
    %455 = vmatpush.msra.mxu0 0.0
    %456 = vmatpush.msra.mxu0 0.0
    %457 = vmatpush.msra.mxu0 0.0
    %458 = vmatpush.msra.mxu0 %v421
    %459 = vmatmul.f32.gmra.mxu0 %v416
    %v460 = vpop.f32.mrf.mxu0
    %v461 = vadd.f32 0.0, %v460
    %462 = vdwg.mxu0
    %463 = vst [vmem:[#allocation1] ss:$2 sm:$0xff] %v191
    %v464 = vld.sshfl [vmem:[#allocation1] sm:$0xff pattern:$0x75316420]
    %v465 = vld.sshfl [vmem:[#allocation1 + $0x8] sm:$0xff pattern:$0x75316420]
    %v467 = vsel %vm414, %v409, 0
    %v469 = vsel %vm418, %v464, 0
    %v471 = vsel %vm418, %v465, 0
    %473 = vmatpush.msra.mxu0 0.0
    %474 = vmatpush.msra.mxu0 0.0
    %475 = vmatpush.msra.mxu0 0.0
    %476 = vmatpush.msra.mxu0 0.0
    %477 = vmatpush.msra.mxu0 0.0
    %478 = vmatpush.msra.mxu0 0.0
    %479 = vmatpush.msra.mxu0 0.0
    %480 = vmatpush.msra.mxu0 0.0
    %481 = vmatpush.msra.mxu0 0.0
    %482 = vmatpush.msra.mxu0 0.0
    %483 = vmatpush.msra.mxu0 0.0
    %484 = vmatpush.msra.mxu0 0.0
    %485 = vmatpush.msra.mxu0 0.0
    %486 = vmatpush.msra.mxu0 0.0
    %487 = vmatpush.msra.mxu0 0.0
    %488 = vmatpush.msra.mxu0 %v469
    %489 = vmatmul.f32.gmra.mxu0 %v467
    %v490 = vpop.f32.mrf.mxu0
    %v491 = vadd.f32 0.0, %v490
    %492 = vdwg.mxu0
    %493 = vmatpush.msra.mxu0 0.0
    %494 = vmatpush.msra.mxu0 0.0
    %495 = vmatpush.msra.mxu0 0.0
    %496 = vmatpush.msra.mxu0 0.0
    %497 = vmatpush.msra.mxu0 0.0
    %498 = vmatpush.msra.mxu0 0.0
    %499 = vmatpush.msra.mxu0 0.0
    %500 = vmatpush.msra.mxu0 0.0
    %501 = vmatpush.msra.mxu0 0.0
    %502 = vmatpush.msra.mxu0 0.0
    %503 = vmatpush.msra.mxu0 0.0
    %504 = vmatpush.msra.mxu0 0.0
    %505 = vmatpush.msra.mxu0 0.0
    %506 = vmatpush.msra.mxu0 0.0
    %507 = vmatpush.msra.mxu0 0.0
    %508 = vmatpush.msra.mxu0 %v471
    %509 = vmatmul.f32.gmra.mxu0 %v467
    %v510 = vpop.f32.mrf.mxu0
    %v511 = vadd.f32 0.0, %v510
    %512 = vdwg.mxu0
    %v513 = vperm.slane %v441, 0
    %v514 = vperm.slane %v461, 0
    %v515 = vmul.f32 %v238, %v513
    %v516 = vmul.f32 %v278, %v514
    %v517 = vperm.slane %v491, 0
    %v518 = vperm.slane %v511, 0
    %v519 = vadd.f32 %v515, %v517
    %v520 = vadd.f32 %v516, %v518
    %v521 = vmax.f32 %v519, 0.0
    %v522 = vmax.f32 %v520, 0.0
    %v523 = vld [vmem:[%s6] sm:$0xff]
    %v524 = vld [vmem:[%s6 + $0x8] sm:$0xff]
    %v525 = vld [vmem:[%s6 + $0x10] sm:$0xff]
    %v526 = vld [vmem:[%s6 + $0x18] sm:$0xff]
    %v527 = vld [vmem:[%s6 + $0x20] sm:$0xff]
    %v528 = vld [vmem:[%s6 + $0x28] sm:$0xff]
    %v529 = vld [vmem:[%s6 + $0x30] sm:$0xff]
    %v530 = vld [vmem:[%s6 + $0x38] sm:$0xff]
    %v531 = vld [vmem:[%s6 + $0x40] sm:$0xff]
    %v532 = vld [vmem:[%s6 + $0x48] sm:$0xff]
    %v533 = vld [vmem:[%s6 + $0x50] sm:$0xff]
    %v534 = vld [vmem:[%s6 + $0x58] sm:$0xff]
    %v535 = vld [vmem:[%s6 + $0x60] sm:$0xff]
    %v536 = vld [vmem:[%s6 + $0x68] sm:$0xff]
    %v537 = vld [vmem:[%s6 + $0x70] sm:$0xff]
    %v538 = vld [vmem:[%s6 + $0x78] sm:$0xff]
    %v539 = vld [vmem:[%s6 + $0x80] sm:$0xff]
    %v540 = vld [vmem:[%s6 + $0x88] sm:$0xff]
    %v541 = vld [vmem:[%s6 + $0x90] sm:$0xff]
    %v542 = vld [vmem:[%s6 + $0x98] sm:$0xff]
    %v543 = vld [vmem:[%s6 + $0xa0] sm:$0xff]
    %v544 = vld [vmem:[%s6 + $0xa8] sm:$0xff]
    %v545 = vld [vmem:[%s6 + $0xb0] sm:$0xff]
    %v546 = vld [vmem:[%s6 + $0xb8] sm:$0xff]
    %v547 = vld [vmem:[%s6 + $0xc0] sm:$0xff]
    %v548 = vld [vmem:[%s6 + $0xc8] sm:$0xff]
    %v549 = vld [vmem:[%s6 + $0xd0] sm:$0xff]
    %v550 = vld [vmem:[%s6 + $0xd8] sm:$0xff]
    %v551 = vld [vmem:[%s6 + $0xe0] sm:$0xff]
    %v552 = vld [vmem:[%s6 + $0xe8] sm:$0xff]
    %v553 = vld [vmem:[%s6 + $0xf0] sm:$0xff]
    %v554 = vld [vmem:[%s6 + $0xf8] sm:$0xff]
    %v555 = vld [vmem:[%s7] sm:$0xff]
    %v556 = vld [vmem:[%s7 + $0x8] sm:$0xff]
    %v557 = vld [vmem:[%s7 + $0x10] sm:$0xff]
    %v558 = vld [vmem:[%s7 + $0x18] sm:$0xff]
    %v559 = vld [vmem:[%s7 + $0x20] sm:$0xff]
    %v560 = vld [vmem:[%s7 + $0x28] sm:$0xff]
    %v561 = vld [vmem:[%s7 + $0x30] sm:$0xff]
    %v562 = vld [vmem:[%s7 + $0x38] sm:$0xff]
    %v563 = vld [vmem:[%s7 + $0x40] sm:$0xff]
    %v564 = vld [vmem:[%s7 + $0x48] sm:$0xff]
    %v565 = vld [vmem:[%s7 + $0x50] sm:$0xff]
    %v566 = vld [vmem:[%s7 + $0x58] sm:$0xff]
    %v567 = vld [vmem:[%s7 + $0x60] sm:$0xff]
    %v568 = vld [vmem:[%s7 + $0x68] sm:$0xff]
    %v569 = vld [vmem:[%s7 + $0x70] sm:$0xff]
    %v570 = vld [vmem:[%s7 + $0x78] sm:$0xff]
    %v571 = vld [vmem:[%s8] sm:$0xff]
    %v572 = vld [vmem:[%s9] sm:$0x1]
    %v573 = vld [vmem:[%s10] sm:$0x1]
    %574 = vmatpush.msra.mxu0 %v538
    %575 = vmatpush.msra.mxu0 %v537
    %576 = vmatpush.msra.mxu0 %v536
    %577 = vmatpush.msra.mxu0 %v535
    %578 = vmatpush.msra.mxu0 %v534
    %579 = vmatpush.msra.mxu0 %v533
    %580 = vmatpush.msra.mxu0 %v532
    %581 = vmatpush.msra.mxu0 %v531
    %582 = vmatpush.msra.mxu0 %v530
    %583 = vmatpush.msra.mxu0 %v529
    %584 = vmatpush.msra.mxu0 %v528
    %585 = vmatpush.msra.mxu0 %v527
    %586 = vmatpush.msra.mxu0 %v526
    %587 = vmatpush.msra.mxu0 %v525
    %588 = vmatpush.msra.mxu0 %v524
    %589 = vmatpush.msra.mxu0 %v523
    %590 = vmatmul.f32.gmra.mxu0 %v521
    %v591 = vpop.f32.mrf.mxu0
    %v592 = vadd.f32 0.0, %v591
    %593 = vdwg.mxu0
    %594 = vmatpush.msra.mxu0 %v554
    %595 = vmatpush.msra.mxu0 %v553
    %596 = vmatpush.msra.mxu0 %v552
    %597 = vmatpush.msra.mxu0 %v551
    %598 = vmatpush.msra.mxu0 %v550
    %599 = vmatpush.msra.mxu0 %v549
    %600 = vmatpush.msra.mxu0 %v548
    %601 = vmatpush.msra.mxu0 %v547
    %602 = vmatpush.msra.mxu0 %v546
    %603 = vmatpush.msra.mxu0 %v545
    %604 = vmatpush.msra.mxu0 %v544
    %605 = vmatpush.msra.mxu0 %v543
    %606 = vmatpush.msra.mxu0 %v542
    %607 = vmatpush.msra.mxu0 %v541
    %608 = vmatpush.msra.mxu0 %v540
    %609 = vmatpush.msra.mxu0 %v539
    %610 = vmatmul.f32.gmra.mxu0 %v522
    %v611 = vpop.f32.mrf.mxu0
    %v612 = vadd.f32 %v592, %v611
    %613 = vdwg.mxu0
    %v614 = vsel %vm280, %v612, 0.0
    %v615 = vrot.slane %v614, 4
    %v616 = vadd.f32 %v614, %v615
    %v617 = vrot.slane %v616, 2
    %v618 = vadd.f32 %v616, %v617
    %v619 = vrot.slane %v618, 1
    %v620 = vadd.f32 %v618, %v619
    %621 = vmatpush.msra.mxu0 %v570
    %622 = vmatpush.msra.mxu0 %v569
    %623 = vmatpush.msra.mxu0 %v568
    %624 = vmatpush.msra.mxu0 %v567
    %625 = vmatpush.msra.mxu0 %v566
    %626 = vmatpush.msra.mxu0 %v565
    %627 = vmatpush.msra.mxu0 %v564
    %628 = vmatpush.msra.mxu0 %v563
    %629 = vmatpush.msra.mxu0 %v562
    %630 = vmatpush.msra.mxu0 %v561
    %631 = vmatpush.msra.mxu0 %v560
    %632 = vmatpush.msra.mxu0 %v559
    %633 = vmatpush.msra.mxu0 %v558
    %634 = vmatpush.msra.mxu0 %v557
    %635 = vmatpush.msra.mxu0 %v556
    %636 = vmatpush.msra.mxu0 %v555
    %637 = vmatmul.f32.gmra.mxu0 %v620
    %v638 = vpop.f32.mrf.mxu0
    %v639 = vadd.f32 0.0, %v638
    %640 = vdwg.mxu0
    %v641 = vmul.f32 %v612, %v612
    %v642 = vsel %vm280, %v641, 0.0
    %v643 = vrot.slane %v642, 4
    %v644 = vadd.f32 %v642, %v643
    %v645 = vrot.slane %v644, 2
    %v646 = vadd.f32 %v644, %v645
    %v647 = vrot.slane %v646, 1
    %v648 = vadd.f32 %v646, %v647
    %649 = vmatpush.msra.mxu0 %v570
    %650 = vmatpush.msra.mxu0 %v569
    %651 = vmatpush.msra.mxu0 %v568
    %652 = vmatpush.msra.mxu0 %v567
    %653 = vmatpush.msra.mxu0 %v566
    %654 = vmatpush.msra.mxu0 %v565
    %655 = vmatpush.msra.mxu0 %v564
    %656 = vmatpush.msra.mxu0 %v563
    %657 = vmatpush.msra.mxu0 %v562
    %658 = vmatpush.msra.mxu0 %v561
    %659 = vmatpush.msra.mxu0 %v560
    %660 = vmatpush.msra.mxu0 %v559
    %661 = vmatpush.msra.mxu0 %v558
    %662 = vmatpush.msra.mxu0 %v557
    %663 = vmatpush.msra.mxu0 %v556
    %664 = vmatpush.msra.mxu0 %v555
    %665 = vmatmul.f32.gmra.mxu0 %v648
    %v666 = vpop.f32.mrf.mxu0
    %v667 = vadd.f32 0.0, %v666
    %668 = vdwg.mxu0
    %v669 = vmul.f32 %v639, 0.03125
    %v670 = vmul.f32 %v667, 0.03125
    %v671 = vmul.f32 %v669, %v669
    %v672 = vsub.f32 %v670, %v671
    %v673 = vmax.f32 %v672, 0.0
    %v674 = vadd.f32 %v673, 1e-05
    %v675 = vrsqrt.pop %v674
    %v676 = vmul.f32 %v675, %v674
    %v677 = vmul.f32 %v676, %v675
    %v678 = vmul.f32 0.5, %v677
    %v679 = vsub.f32 1.5, %v678
    %v680 = vmul.f32 %v675, %v679
    %vm681 = vweird.f32 %v674
    %vm682 = vweird.f32 %v675
    %vm683 = vmor %vm681, %vm682
    %v684 = vsel %vm683, %v675, %v680
    %v685 = vmul.f32 %v572, %v684
    %v686 = vmul.f32 %v669, %v685
    %v687 = vsub.f32 %v573, %v686
    %vm688 = vcmask 64512
    %v690 = vsel %vm688, %v685, 0
    %692 = vmatpush.msra.mxu0 0.0
    %693 = vmatpush.msra.mxu0 0.0
    %694 = vmatpush.msra.mxu0 0.0
    %695 = vmatpush.msra.mxu0 0.0
    %696 = vmatpush.msra.mxu0 0.0
    %697 = vmatpush.msra.mxu0 0.0
    %698 = vmatpush.msra.mxu0 0.0
    %699 = vmatpush.msra.mxu0 0.0
    %700 = vmatpush.msra.mxu0 0.0
    %701 = vmatpush.msra.mxu0 0.0
    %702 = vmatpush.msra.mxu0 0.0
    %703 = vmatpush.msra.mxu0 0.0
    %704 = vmatpush.msra.mxu0 0.0
    %705 = vmatpush.msra.mxu0 0.0
    %706 = vmatpush.msra.mxu0 0.0
    %707 = vmatpush.msra.mxu0 %v571
    %708 = vmatmul.f32.gmra.mxu0 %v690
    %v709 = vpop.f32.mrf.mxu0
    %v710 = vadd.f32 0.0, %v709
    %711 = vdwg.mxu0
    %v713 = vsel %vm688, %v687, 0
    %715 = vmatpush.msra.mxu0 0.0
    %716 = vmatpush.msra.mxu0 0.0
    %717 = vmatpush.msra.mxu0 0.0
    %718 = vmatpush.msra.mxu0 0.0
    %719 = vmatpush.msra.mxu0 0.0
    %720 = vmatpush.msra.mxu0 0.0
    %721 = vmatpush.msra.mxu0 0.0
    %722 = vmatpush.msra.mxu0 0.0
    %723 = vmatpush.msra.mxu0 0.0
    %724 = vmatpush.msra.mxu0 0.0
    %725 = vmatpush.msra.mxu0 0.0
    %726 = vmatpush.msra.mxu0 0.0
    %727 = vmatpush.msra.mxu0 0.0
    %728 = vmatpush.msra.mxu0 0.0
    %729 = vmatpush.msra.mxu0 0.0
    %730 = vmatpush.msra.mxu0 %v571
    %731 = vmatmul.f32.gmra.mxu0 %v713
    %v732 = vpop.f32.mrf.mxu0
    %v733 = vadd.f32 0.0, %v732
    %734 = vdwg.mxu0
    %v735 = vperm.slane %v710, 0
    %v736 = vmul.f32 %v612, %v735
    %v737 = vperm.slane %v733, 0
    %v738 = vadd.f32 %v736, %v737
    %v739 = vmax.f32 %v738, 0.0
    %v740 = vld [vmem:[%s11] sm:$0xff]
    %v741 = vld [vmem:[%s11 + $0x8] sm:$0xff]
    %v742 = vld [vmem:[%s11 + $0x10] sm:$0xff]
    %v743 = vld [vmem:[%s11 + $0x18] sm:$0xff]
    %v744 = vld [vmem:[%s11 + $0x20] sm:$0xff]
    %v745 = vld [vmem:[%s11 + $0x28] sm:$0xff]
    %v746 = vld [vmem:[%s11 + $0x30] sm:$0xff]
    %v747 = vld [vmem:[%s11 + $0x38] sm:$0xff]
    %v748 = vld [vmem:[%s11 + $0x40] sm:$0xff]
    %v749 = vld [vmem:[%s11 + $0x48] sm:$0xff]
    %v750 = vld [vmem:[%s11 + $0x50] sm:$0xff]
    %v751 = vld [vmem:[%s11 + $0x58] sm:$0xff]
    %v752 = vld [vmem:[%s11 + $0x60] sm:$0xff]
    %v753 = vld [vmem:[%s11 + $0x68] sm:$0xff]
    %v754 = vld [vmem:[%s11 + $0x70] sm:$0xff]
    %v755 = vld [vmem:[%s11 + $0x78] sm:$0xff]
    %v756 = vld [vmem:[%s12] sm:$0xff]
    %v757 = vld [vmem:[%s12 + $0x8] sm:$0xff]
    %v758 = vld [vmem:[%s12 + $0x10] sm:$0xff]
    %v759 = vld [vmem:[%s12 + $0x18] sm:$0xff]
    %v760 = vld [vmem:[%s12 + $0x20] sm:$0xff]
    %v761 = vld [vmem:[%s12 + $0x28] sm:$0xff]
    %v762 = vld [vmem:[%s12 + $0x30] sm:$0xff]
    %v763 = vld [vmem:[%s12 + $0x38] sm:$0xff]
    %v764 = vld [vmem:[%s13] sm:$0xff]
    %v765 = vld [vmem:[%s13 + $0x8] sm:$0xff]
    %v766 = vld [vmem:[%s14] sm:$0x1]
    %v767 = vld [vmem:[%s15] sm:$0x1]
    %768 = vmatpush.msra.mxu0 %v755
    %769 = vmatpush.msra.mxu0 %v754
    %770 = vmatpush.msra.mxu0 %v753
    %771 = vmatpush.msra.mxu0 %v752
    %772 = vmatpush.msra.mxu0 %v751
    %773 = vmatpush.msra.mxu0 %v750
    %774 = vmatpush.msra.mxu0 %v749
    %775 = vmatpush.msra.mxu0 %v748
    %776 = vmatpush.msra.mxu0 %v747
    %777 = vmatpush.msra.mxu0 %v746
    %778 = vmatpush.msra.mxu0 %v745
    %779 = vmatpush.msra.mxu0 %v744
    %780 = vmatpush.msra.mxu0 %v743
    %781 = vmatpush.msra.mxu0 %v742
    %782 = vmatpush.msra.mxu0 %v741
    %783 = vmatpush.msra.mxu0 %v740
    %784 = vmatmul.f32.gmra.mxu0 %v739
    %v785 = vpop.f32.mrf.mxu0
    %v786 = vadd.f32 0.0, %v785
    %787 = vdwg.mxu0
    %vm788 = vcmask 517120
    %v789 = vsel %vm788, %v786, 0.0
    %v790 = vrot.slane %v789, 4
    %v791 = vadd.f32 %v789, %v790
    %v792 = vrot.slane %v791, 2
    %v793 = vadd.f32 %v791, %v792
    %v794 = vrot.slane %v793, 1
    %v795 = vadd.f32 %v793, %v794
    %vm796 = vcmask 523264
    %v798 = vsel %vm796, %v795, 0
    %800 = vmatpush.msra.mxu0 0.0
    %801 = vmatpush.msra.mxu0 0.0
    %802 = vmatpush.msra.mxu0 0.0
    %803 = vmatpush.msra.mxu0 0.0
    %804 = vmatpush.msra.mxu0 0.0
    %805 = vmatpush.msra.mxu0 0.0
    %806 = vmatpush.msra.mxu0 0.0
    %807 = vmatpush.msra.mxu0 0.0
    %808 = vmatpush.msra.mxu0 %v763
    %809 = vmatpush.msra.mxu0 %v762
    %810 = vmatpush.msra.mxu0 %v761
    %811 = vmatpush.msra.mxu0 %v760
    %812 = vmatpush.msra.mxu0 %v759
    %813 = vmatpush.msra.mxu0 %v758
    %814 = vmatpush.msra.mxu0 %v757
    %815 = vmatpush.msra.mxu0 %v756
    %816 = vmatmul.f32.gmra.mxu0 %v798
    %v817 = vpop.f32.mrf.mxu0
    %v818 = vadd.f32 0.0, %v817
    %819 = vdwg.mxu0
    %v820 = vmul.f32 %v786, %v786
    %v821 = vsel %vm788, %v820, 0.0
    %v822 = vrot.slane %v821, 4
    %v823 = vadd.f32 %v821, %v822
    %v824 = vrot.slane %v823, 2
    %v825 = vadd.f32 %v823, %v824
    %v826 = vrot.slane %v825, 1
    %v827 = vadd.f32 %v825, %v826
    %v829 = vsel %vm796, %v827, 0
    %831 = vmatpush.msra.mxu0 0.0
    %832 = vmatpush.msra.mxu0 0.0
    %833 = vmatpush.msra.mxu0 0.0
    %834 = vmatpush.msra.mxu0 0.0
    %835 = vmatpush.msra.mxu0 0.0
    %836 = vmatpush.msra.mxu0 0.0
    %837 = vmatpush.msra.mxu0 0.0
    %838 = vmatpush.msra.mxu0 0.0
    %839 = vmatpush.msra.mxu0 %v763
    %840 = vmatpush.msra.mxu0 %v762
    %841 = vmatpush.msra.mxu0 %v761
    %842 = vmatpush.msra.mxu0 %v760
    %843 = vmatpush.msra.mxu0 %v759
    %844 = vmatpush.msra.mxu0 %v758
    %845 = vmatpush.msra.mxu0 %v757
    %846 = vmatpush.msra.mxu0 %v756
    %847 = vmatmul.f32.gmra.mxu0 %v829
    %v848 = vpop.f32.mrf.mxu0
    %v849 = vadd.f32 0.0, %v848
    %850 = vdwg.mxu0
    %v851 = vmul.f32 %v818, 0.125
    %v852 = vmul.f32 %v849, 0.125
    %v853 = vmul.f32 %v851, %v851
    %v854 = vsub.f32 %v852, %v853
    %v855 = vmax.f32 %v854, 0.0
    %v856 = vadd.f32 %v855, 1e-05
    %v857 = vrsqrt.pop %v856
    %v858 = vmul.f32 %v857, %v856
    %v859 = vmul.f32 %v858, %v857
    %v860 = vmul.f32 0.5, %v859
    %v861 = vsub.f32 1.5, %v860
    %v862 = vmul.f32 %v857, %v861
    %vm863 = vweird.f32 %v856
    %vm864 = vweird.f32 %v857
    %vm865 = vmor %vm863, %vm864
    %v866 = vsel %vm865, %v857, %v862
    %v867 = vmul.f32 %v766, %v866
    %v868 = vmul.f32 %v851, %v867
    %v869 = vsub.f32 %v767, %v868
    %vm870 = vcmask 130048
    %v872 = vsel %vm870, %v867, 0
    %874 = vmatpush.msra.mxu0 0.0
    %875 = vmatpush.msra.mxu0 0.0
    %876 = vmatpush.msra.mxu0 0.0
    %877 = vmatpush.msra.mxu0 0.0
    %878 = vmatpush.msra.mxu0 0.0
    %879 = vmatpush.msra.mxu0 0.0
    %880 = vmatpush.msra.mxu0 0.0
    %881 = vmatpush.msra.mxu0 0.0
    %882 = vmatpush.msra.mxu0 0.0
    %883 = vmatpush.msra.mxu0 0.0
    %884 = vmatpush.msra.mxu0 0.0
    %885 = vmatpush.msra.mxu0 0.0
    %886 = vmatpush.msra.mxu0 0.0
    %887 = vmatpush.msra.mxu0 0.0
    %888 = vmatpush.msra.mxu0 %v765
    %889 = vmatpush.msra.mxu0 %v764
    %890 = vmatmul.f32.gmra.mxu0 %v872
    %v891 = vpop.f32.mrf.mxu0
    %v892 = vadd.f32 0.0, %v891
    %893 = vdwg.mxu0
    %v895 = vsel %vm870, %v869, 0
    %897 = vmatpush.msra.mxu0 0.0
    %898 = vmatpush.msra.mxu0 0.0
    %899 = vmatpush.msra.mxu0 0.0
    %900 = vmatpush.msra.mxu0 0.0
    %901 = vmatpush.msra.mxu0 0.0
    %902 = vmatpush.msra.mxu0 0.0
    %903 = vmatpush.msra.mxu0 0.0
    %904 = vmatpush.msra.mxu0 0.0
    %905 = vmatpush.msra.mxu0 0.0
    %906 = vmatpush.msra.mxu0 0.0
    %907 = vmatpush.msra.mxu0 0.0
    %908 = vmatpush.msra.mxu0 0.0
    %909 = vmatpush.msra.mxu0 0.0
    %910 = vmatpush.msra.mxu0 0.0
    %911 = vmatpush.msra.mxu0 %v765
    %912 = vmatpush.msra.mxu0 %v764
    %913 = vmatmul.f32.gmra.mxu0 %v895
    %v914 = vpop.f32.mrf.mxu0
    %v915 = vadd.f32 0.0, %v914
    %916 = vdwg.mxu0
    %v917 = vperm.slane %v892, 0
    %v918 = vmul.f32 %v786, %v917
    %v919 = vperm.slane %v915, 0
    %v920 = vadd.f32 %v918, %v919
    %v921 = vmax.f32 %v920, 0.0
    %v922 = vld [vmem:[%s16] sm:$0xff]
    %v923 = vld [vmem:[%s16 + $0x8] sm:$0xff]
    %v924 = vld [vmem:[%s16 + $0x10] sm:$0xff]
    %v925 = vld [vmem:[%s16 + $0x18] sm:$0xff]
    %v926 = vld [vmem:[%s16 + $0x20] sm:$0xff]
    %v927 = vld [vmem:[%s16 + $0x28] sm:$0xff]
    %v928 = vld [vmem:[%s16 + $0x30] sm:$0xff]
    %v929 = vld [vmem:[%s16 + $0x38] sm:$0xff]
    %v930 = vld [vmem:[%s16 + $0x40] sm:$0xff]
    %v931 = vld [vmem:[%s16 + $0x48] sm:$0xff]
    %v932 = vld [vmem:[%s16 + $0x50] sm:$0xff]
    %v933 = vld [vmem:[%s16 + $0x58] sm:$0xff]
    %v934 = vld [vmem:[%s16 + $0x60] sm:$0xff]
    %v935 = vld [vmem:[%s16 + $0x68] sm:$0xff]
    %v936 = vld [vmem:[%s16 + $0x70] sm:$0xff]
    %v937 = vld [vmem:[%s16 + $0x78] sm:$0xff]
    %v939 = vsel %vm796, %v921, 0
    %941 = vmatpush.msra.mxu0 0.0
    %942 = vmatpush.msra.mxu0 0.0
    %943 = vmatpush.msra.mxu0 0.0
    %944 = vmatpush.msra.mxu0 0.0
    %945 = vmatpush.msra.mxu0 0.0
    %946 = vmatpush.msra.mxu0 0.0
    %947 = vmatpush.msra.mxu0 0.0
    %948 = vmatpush.msra.mxu0 0.0
    %949 = vmatpush.msra.mxu0 %v936
    %950 = vmatpush.msra.mxu0 %v934
    %951 = vmatpush.msra.mxu0 %v932
    %952 = vmatpush.msra.mxu0 %v930
    %953 = vmatpush.msra.mxu0 %v928
    %954 = vmatpush.msra.mxu0 %v926
    %955 = vmatpush.msra.mxu0 %v924
    %956 = vmatpush.msra.mxu0 %v922
    %957 = vmatmul.f32.gmra.mxu0 %v939
    %v958 = vpop.f32.mrf.mxu0
    %v959 = vadd.f32 0.0, %v958
    %960 = vdwg.mxu0
    %961 = vmatpush.msra.mxu0 0.0
    %962 = vmatpush.msra.mxu0 0.0
    %963 = vmatpush.msra.mxu0 0.0
    %964 = vmatpush.msra.mxu0 0.0
    %965 = vmatpush.msra.mxu0 0.0
    %966 = vmatpush.msra.mxu0 0.0
    %967 = vmatpush.msra.mxu0 0.0
    %968 = vmatpush.msra.mxu0 0.0
    %969 = vmatpush.msra.mxu0 %v937
    %970 = vmatpush.msra.mxu0 %v935
    %971 = vmatpush.msra.mxu0 %v933
    %972 = vmatpush.msra.mxu0 %v931
    %973 = vmatpush.msra.mxu0 %v929
    %974 = vmatpush.msra.mxu0 %v927
    %975 = vmatpush.msra.mxu0 %v925
    %976 = vmatpush.msra.mxu0 %v923
    %977 = vmatmul.f32.gmra.mxu0 %v939
    %v978 = vpop.f32.mrf.mxu0
    %v979 = vadd.f32 0.0, %v978
    %980 = vdwg.mxu0
    %v981 = vld [vmem:[%s17] sm:$0x1]
    %v982 = vld [vmem:[%s19] sm:$0x1]
    %v983 = vld [vmem:[%s18] sm:$0xff]
    %v984 = vld [vmem:[%s18 + $0x8] sm:$0xff]
    %v985 = vld [vmem:[%s18 + $0x10] sm:$0xff]
    %v986 = vld [vmem:[%s18 + $0x18] sm:$0xff]
    %v988 = vperm.slane %v981, 0
    %v990 = vadd.f32 %v959, %v988
    %v992 = vperm.slane %v982, 0
    %vm994 = vcmask 261120
    %v996 = vsel %vm994, 0.0, 0
    %998 = vmatpush.msra.mxu0 0.0
    %999 = vmatpush.msra.mxu0 0.0
    %1000 = vmatpush.msra.mxu0 0.0
    %1001 = vmatpush.msra.mxu0 0.0
    %1002 = vmatpush.msra.mxu0 0.0
    %1003 = vmatpush.msra.mxu0 0.0
    %1004 = vmatpush.msra.mxu0 0.0
    %1005 = vmatpush.msra.mxu0 0.0
    %1006 = vmatpush.msra.mxu0 0.0
    %1007 = vmatpush.msra.mxu0 0.0
    %1008 = vmatpush.msra.mxu0 0.0
    %1009 = vmatpush.msra.mxu0 0.0
    %1010 = vmatpush.msra.mxu0 %v986
    %1011 = vmatpush.msra.mxu0 %v985
    %1012 = vmatpush.msra.mxu0 %v984
    %1013 = vmatpush.msra.mxu0 %v983
    %1014 = vmatmul.f32.gmra.mxu0 %v996
    %v1015 = vpop.f32.mrf.mxu0
    %v1016 = vadd.f32 %v992, %v1015
    %1017 = vdwg.mxu0
    %v1018 = vadd.f32 %v990, %v1016
    %v1019 = vxor.u32 %v1018, 2147483648
    %v1020 = vmul.f32 %v1019, 1.442695
    %v1021 = vpow.pop %v1020
    %v1022 = vadd.f32 %v1021, 1.0
    %v1023 = vrcp.pop %v1022
    %v1024 = vmul.f32 %v1022, %v1023
    %v1025 = vsub.f32 1.0, %v1024
    %v1026 = vmul.f32 %v1023, %v1025
    %v1027 = vadd.f32 %v1023, %v1026
    %vm1028 = vweird.f32 %v1022
    %vm1029 = vweird.f32 %v1023
    %vm1030 = vmor %vm1028, %vm1029
    %v1031 = vsel %vm1030, %v1023, %v1027
    %v1032 = vand.u32 2147483647, %v1022
    %vm1033 = vcmp.eq.f32.partialorder %v1032, 8.507059e+37
    %v1034 = vand.u32 %v1022, 2147483648
    %v1035 = vor.u32 1.1754944e-38, %v1034
    %v1036 = vsel %vm1033, %v1035, %v1031
    %v1037 = vmul.f32 1.0, %v1036
    %1039 = vrot.lane.b32.xlu0 %v1016, 64
    %v1040 = vpop.permute.xlu0 %1039
    %v1042 = vmul.f32 %v1037, %v1040
    %1044 = vrot.lane.b32.xlu0 %v1042, 64
    %v1045 = vpop.permute.xlu0 %1044
    %v1047 = vadd.f32 %v990, %v1045
    %v1048 = vtanh.pop %v1047
    %v1049 = vsub.f32 1.0, %v1037
    %1051 = vrot.lane.b32.xlu0 %v1048, 96
    %v1052 = vpop.permute.xlu0 %1051
    %v1054 = vmul.f32 %v1049, %v1052
    %v1055 = vmul.f32 %v1037, 0.0
    %v1056 = vadd.f32 %v1054, %v1055
    %1057 = vrot.lane.b32.xlu0 %v988, 96
    %v1058 = vpop.permute.xlu0 %1057
    %v1060 = vadd.f32 %v959, %v1058
    %v1061 = vadd.f32 %v979, %v1058
    %1063 = vrot.lane.b32.xlu0 %v1056, 96
    %v1064 = vpop.permute.xlu0 %1063
    %v1065 = vsel %vm994, %v1064, 0
    %1067 = vmatpush.msra.mxu0 0.0
    %1068 = vmatpush.msra.mxu0 0.0
    %1069 = vmatpush.msra.mxu0 0.0
    %1070 = vmatpush.msra.mxu0 0.0
    %1071 = vmatpush.msra.mxu0 0.0
    %1072 = vmatpush.msra.mxu0 0.0
    %1073 = vmatpush.msra.mxu0 0.0
    %1074 = vmatpush.msra.mxu0 0.0
    %1075 = vmatpush.msra.mxu0 0.0
    %1076 = vmatpush.msra.mxu0 0.0
    %1077 = vmatpush.msra.mxu0 0.0
    %1078 = vmatpush.msra.mxu0 0.0
    %1079 = vmatpush.msra.mxu0 %v986
    %1080 = vmatpush.msra.mxu0 %v985
    %1081 = vmatpush.msra.mxu0 %v984
    %1082 = vmatpush.msra.mxu0 %v983
    %1083 = vmatmul.f32.gmra.mxu0 %v1065
    %v1084 = vpop.f32.mrf.mxu0
    %v1085 = vadd.f32 %v992, %v1084
    %1086 = vdwg.mxu0
    %1088 = vrot.lane.b32.xlu0 %v1085, 96
    %v1089 = vpop.permute.xlu0 %1088
    %v1091 = vadd.f32 %v1060, %v1089
    %v1092 = vxor.u32 %v1091, 2147483648
    %v1093 = vmul.f32 %v1092, 1.442695
    %v1094 = vpow.pop %v1093
    %v1095 = vadd.f32 %v1094, 1.0
    %v1096 = vrcp.pop %v1095
    %v1097 = vmul.f32 %v1095, %v1096
    %v1098 = vsub.f32 1.0, %v1097
    %v1099 = vmul.f32 %v1096, %v1098
    %v1100 = vadd.f32 %v1096, %v1099
    %vm1101 = vweird.f32 %v1095
    %vm1102 = vweird.f32 %v1096
    %vm1103 = vmor %vm1101, %vm1102
    %v1104 = vsel %vm1103, %v1096, %v1100
    %v1105 = vand.u32 2147483647, %v1095
    %vm1106 = vcmp.eq.f32.partialorder %v1105, 8.507059e+37
    %v1107 = vand.u32 %v1095, 2147483648
    %v1108 = vor.u32 1.1754944e-38, %v1107
    %v1109 = vsel %vm1106, %v1108, %v1104
    %v1110 = vmul.f32 1.0, %v1109
    %v1111 = vadd.f32 %v1061, %v1089
    %v1112 = vxor.u32 %v1111, 2147483648
    %v1113 = vmul.f32 %v1112, 1.442695
    %v1114 = vpow.pop %v1113
    %v1115 = vadd.f32 %v1114, 1.0
    %v1116 = vrcp.pop %v1115
    %v1117 = vmul.f32 %v1115, %v1116
    %v1118 = vsub.f32 1.0, %v1117
    %v1119 = vmul.f32 %v1116, %v1118
    %v1120 = vadd.f32 %v1116, %v1119
    %vm1121 = vweird.f32 %v1115
    %vm1122 = vweird.f32 %v1116
    %vm1123 = vmor %vm1121, %vm1122
    %v1124 = vsel %vm1123, %v1116, %v1120
    %v1125 = vand.u32 2147483647, %v1115
    %vm1126 = vcmp.eq.f32.partialorder %v1125, 8.507059e+37
    %v1127 = vand.u32 %v1115, 2147483648
    %v1128 = vor.u32 1.1754944e-38, %v1127
    %v1129 = vsel %vm1126, %v1128, %v1124
    %v1130 = vmul.f32 1.0, %v1129
    %1131 = vrot.lane.b32.xlu0 %v1085, 32
    %v1132 = vpop.permute.xlu0 %1131
    %v1134 = vmul.f32 %v1110, %v1132
    %1136 = vrot.lane.b32.xlu0 %v1134, 64
    %v1137 = vpop.permute.xlu0 %1136
    %v1139 = vadd.f32 %v1061, %v1137
    %v1140 = vtanh.pop %v1139
    %v1141 = vsub.f32 1.0, %v1130
    %1143 = vrot.lane.b32.xlu0 %v1140, 96
    %v1144 = vpop.permute.xlu0 %1143
    %v1146 = vmul.f32 %v1141, %v1144
    %v1148 = vmul.f32 %v1130, %v1064
    %v1149 = vadd.f32 %v1146, %v1148
    %v1150 = vld [vmem:[%s20] sm:$0xff]
    %v1151 = vtanh.pop %v1150
    %v1152 = vld [vmem:[%s21] sm:$0xff]
    %v1153 = vld [vmem:[%s21 + $0x8] sm:$0xff]
    %v1154 = vld [vmem:[%s21 + $0x10] sm:$0xff]
    %v1155 = vld [vmem:[%s21 + $0x18] sm:$0xff]
    %v1157 = vsel %vm994, %v1149, 0
    %1159 = vmatpush.msra.mxu0 0.0
    %1160 = vmatpush.msra.mxu0 0.0
    %1161 = vmatpush.msra.mxu0 0.0
    %1162 = vmatpush.msra.mxu0 0.0
    %1163 = vmatpush.msra.mxu0 0.0
    %1164 = vmatpush.msra.mxu0 0.0
    %1165 = vmatpush.msra.mxu0 0.0
    %1166 = vmatpush.msra.mxu0 0.0
    %1167 = vmatpush.msra.mxu0 0.0
    %1168 = vmatpush.msra.mxu0 0.0
    %1169 = vmatpush.msra.mxu0 0.0
    %1170 = vmatpush.msra.mxu0 0.0
    %1171 = vmatpush.msra.mxu0 %v1155
    %1172 = vmatpush.msra.mxu0 %v1154
    %1173 = vmatpush.msra.mxu0 %v1153
    %1174 = vmatpush.msra.mxu0 %v1152
    %1175 = vmatmul.f32.gmra.mxu0 %v1157
    %v1176 = vpop.f32.mrf.mxu0
    %v1177 = vadd.f32 0.0, %v1176
    %1178 = vdwg.mxu0
    %v1179 = vld [vmem:[%s22] sm:$0xff]
    %v1181 = vsel %vm688, %v1151, 0
    %1183 = vmatpush.msra.mxu0 0.0
    %1184 = vmatpush.msra.mxu0 0.0
    %1185 = vmatpush.msra.mxu0 0.0
    %1186 = vmatpush.msra.mxu0 0.0
    %1187 = vmatpush.msra.mxu0 0.0
    %1188 = vmatpush.msra.mxu0 0.0
    %1189 = vmatpush.msra.mxu0 0.0
    %1190 = vmatpush.msra.mxu0 0.0
    %1191 = vmatpush.msra.mxu0 0.0
    %1192 = vmatpush.msra.mxu0 0.0
    %1193 = vmatpush.msra.mxu0 0.0
    %1194 = vmatpush.msra.mxu0 0.0
    %1195 = vmatpush.msra.mxu0 0.0
    %1196 = vmatpush.msra.mxu0 0.0
    %1197 = vmatpush.msra.mxu0 0.0
    %1198 = vmatpush.msra.mxu0 %v1179
    %1199 = vmatmul.f32.gmra.mxu0 %v1181
    %v1200 = vpop.f32.mrf.mxu0
    %v1201 = vadd.f32 0.0, %v1200
    %1202 = vdwg.mxu0
    %v1203 = vld [vmem:[%s23] sm:$0xff]
    %1204 = vmatpush.msra.mxu0 0.0
    %1205 = vmatpush.msra.mxu0 0.0
    %1206 = vmatpush.msra.mxu0 0.0
    %1207 = vmatpush.msra.mxu0 0.0
    %1208 = vmatpush.msra.mxu0 0.0
    %1209 = vmatpush.msra.mxu0 0.0
    %1210 = vmatpush.msra.mxu0 0.0
    %1211 = vmatpush.msra.mxu0 0.0
    %1212 = vmatpush.msra.mxu0 0.0
    %1213 = vmatpush.msra.mxu0 0.0
    %1214 = vmatpush.msra.mxu0 0.0
    %1215 = vmatpush.msra.mxu0 0.0
    %1216 = vmatpush.msra.mxu0 0.0
    %1217 = vmatpush.msra.mxu0 0.0
    %1218 = vmatpush.msra.mxu0 0.0
    %1219 = vmatpush.msra.mxu0 %v1203
    %1220 = vmatmul.f32.gmra.mxu0 %v1181
    %v1221 = vpop.f32.mrf.mxu0
    %v1222 = vadd.f32 0.0, %v1221
    %1223 = vdwg.mxu0
    %v1225 = vsel %vm688, %v1177, 0
    %v1228 = vsel %vm688, %v1201, 0
    %1230 = vmatpush.xpose.msra.mxu0 0.0
    %1231 = vmatpush.xpose.msra.mxu0 0.0
    %1232 = vmatpush.xpose.msra.mxu0 0.0
    %1233 = vmatpush.xpose.msra.mxu0 0.0
    %1234 = vmatpush.xpose.msra.mxu0 0.0
    %1235 = vmatpush.xpose.msra.mxu0 0.0
    %1236 = vmatpush.xpose.msra.mxu0 0.0
    %1237 = vmatpush.xpose.msra.mxu0 0.0
    %1238 = vmatpush.xpose.msra.mxu0 0.0
    %1239 = vmatpush.xpose.msra.mxu0 0.0
    %1240 = vmatpush.xpose.msra.mxu0 0.0
    %1241 = vmatpush.xpose.msra.mxu0 0.0
    %1242 = vmatpush.xpose.msra.mxu0 0.0
    %1243 = vmatpush.xpose.msra.mxu0 0.0
    %1244 = vmatpush.xpose.msra.mxu0 0.0
    %1245 = vmatpush.xpose.msra.mxu0 %v1228
    %1246 = vmatmul.f32.gmra.mxu0 %v1225
    %v1247 = vpop.f32.mrf.mxu0
    %v1248 = vadd.f32 0.0, %v1247
    %1249 = vdwg.mxu0
    %v1250 = vmul.f32 %v1248, 0.35355338
    %vm1251 = vcmask 58368
    %v1252 = vsel %vm1251, %v1250, -inf
    %1253 = vmax.xlane.f32.xlu0 %v1252
    %v1254 = vpop.xlane.xlu0 %1253
    %v1255 = vsub.f32 %v1250, %v1254
    %v1256 = vmul.f32 %v1255, 1.442695
    %v1257 = vpow.pop %v1256
    %v1258 = vsel %vm1251, %v1257, 0.0
    %1259 = vadd.xlane.f32.xlu0 %v1258
    %v1260 = vpop.xlane.xlu0 %1259
    %v1261 = vrcp.pop %v1260
    %v1262 = vmul.f32 %v1260, %v1261
    %v1263 = vsub.f32 1.0, %v1262
    %v1264 = vmul.f32 %v1261, %v1263
    %v1265 = vadd.f32 %v1261, %v1264
    %vm1266 = vweird.f32 %v1260
    %vm1267 = vweird.f32 %v1261
    %vm1268 = vmor %vm1266, %vm1267
    %v1269 = vsel %vm1268, %v1261, %v1265
    %v1270 = vand.u32 2147483647, %v1260
    %vm1271 = vcmp.eq.f32.partialorder %v1270, 8.507059e+37
    %v1272 = vand.u32 %v1260, 2147483648
    %v1273 = vor.u32 1.1754944e-38, %v1272
    %v1274 = vsel %vm1271, %v1273, %v1269
    %v1275 = vmul.f32 %v1257, %v1274
    %v1277 = vsel %vm688, %v1275, 0
    %1279 = vmatpush.msra.mxu0 0.0
    %1280 = vmatpush.msra.mxu0 0.0
    %1281 = vmatpush.msra.mxu0 0.0
    %1282 = vmatpush.msra.mxu0 0.0
    %1283 = vmatpush.msra.mxu0 0.0
    %1284 = vmatpush.msra.mxu0 0.0
    %1285 = vmatpush.msra.mxu0 0.0
    %1286 = vmatpush.msra.mxu0 0.0
    %1287 = vmatpush.msra.mxu0 0.0
    %1288 = vmatpush.msra.mxu0 0.0
    %1289 = vmatpush.msra.mxu0 0.0
    %1290 = vmatpush.msra.mxu0 0.0
    %1291 = vmatpush.msra.mxu0 0.0
    %1292 = vmatpush.msra.mxu0 0.0
    %1293 = vmatpush.msra.mxu0 0.0
    %1294 = vmatpush.msra.mxu0 %v1222
    %1295 = vmatmul.f32.gmra.mxu0 %v1277
    %v1296 = vpop.f32.mrf.mxu0
    %v1297 = vadd.f32 0.0, %v1296
    %1298 = vdwg.mxu0
    %1299 = vst.msk [vmem:[#allocation5] sm:$0x3] %vm1251, %v1297
    %1300 = vrot.lane.b32.xlu0 %v1177, 120
    %v1301 = vpop.permute.xlu0 %1300
    %1302 = vrot.lane.b32.xlu0 %v1201, 120
    %v1303 = vpop.permute.xlu0 %1302
    %v1304 = vsel %vm688, %v1301, 0
    %v1306 = vsel %vm688, %v1303, 0
    %1308 = vmatpush.xpose.msra.mxu0 0.0
    %1309 = vmatpush.xpose.msra.mxu0 0.0
    %1310 = vmatpush.xpose.msra.mxu0 0.0
    %1311 = vmatpush.xpose.msra.mxu0 0.0
    %1312 = vmatpush.xpose.msra.mxu0 0.0
    %1313 = vmatpush.xpose.msra.mxu0 0.0
    %1314 = vmatpush.xpose.msra.mxu0 0.0
    %1315 = vmatpush.xpose.msra.mxu0 0.0
    %1316 = vmatpush.xpose.msra.mxu0 0.0
    %1317 = vmatpush.xpose.msra.mxu0 0.0
    %1318 = vmatpush.xpose.msra.mxu0 0.0
    %1319 = vmatpush.xpose.msra.mxu0 0.0
    %1320 = vmatpush.xpose.msra.mxu0 0.0
    %1321 = vmatpush.xpose.msra.mxu0 0.0
    %1322 = vmatpush.xpose.msra.mxu0 0.0
    %1323 = vmatpush.xpose.msra.mxu0 %v1306
    %1324 = vmatmul.f32.gmra.mxu0 %v1304
    %v1325 = vpop.f32.mrf.mxu0
    %v1326 = vadd.f32 0.0, %v1325
    %1327 = vdwg.mxu0
    %v1328 = vmul.f32 %v1326, 0.35355338
    %v1329 = vsel %vm1251, %v1328, -inf
    %1330 = vmax.xlane.f32.xlu0 %v1329
    %v1331 = vpop.xlane.xlu0 %1330
    %v1332 = vsub.f32 %v1328, %v1331
    %v1333 = vmul.f32 %v1332, 1.442695
    %v1334 = vpow.pop %v1333
    %v1335 = vsel %vm1251, %v1334, 0.0
    %1336 = vadd.xlane.f32.xlu0 %v1335
    %v1337 = vpop.xlane.xlu0 %1336
    %v1338 = vrcp.pop %v1337
    %v1339 = vmul.f32 %v1337, %v1338
    %v1340 = vsub.f32 1.0, %v1339
    %v1341 = vmul.f32 %v1338, %v1340
    %v1342 = vadd.f32 %v1338, %v1341
    %vm1343 = vweird.f32 %v1337
    %vm1344 = vweird.f32 %v1338
    %vm1345 = vmor %vm1343, %vm1344
    %v1346 = vsel %vm1345, %v1338, %v1342
    %v1347 = vand.u32 2147483647, %v1337
    %vm1348 = vcmp.eq.f32.partialorder %v1347, 8.507059e+37
    %v1349 = vand.u32 %v1337, 2147483648
    %v1350 = vor.u32 1.1754944e-38, %v1349
    %v1351 = vsel %vm1348, %v1350, %v1346
    %v1352 = vmul.f32 %v1334, %v1351
    %1354 = vrot.lane.b32.xlu0 %v1222, 120
    %v1355 = vpop.permute.xlu0 %1354
    %v1358 = vsel %vm688, %v1352, 0
    %1360 = vmatpush.msra.mxu0 0.0
    %1361 = vmatpush.msra.mxu0 0.0
    %1362 = vmatpush.msra.mxu0 0.0
    %1363 = vmatpush.msra.mxu0 0.0
    %1364 = vmatpush.msra.mxu0 0.0
    %1365 = vmatpush.msra.mxu0 0.0
    %1366 = vmatpush.msra.mxu0 0.0
    %1367 = vmatpush.msra.mxu0 0.0
    %1368 = vmatpush.msra.mxu0 0.0
    %1369 = vmatpush.msra.mxu0 0.0
    %1370 = vmatpush.msra.mxu0 0.0
    %1371 = vmatpush.msra.mxu0 0.0
    %1372 = vmatpush.msra.mxu0 0.0
    %1373 = vmatpush.msra.mxu0 0.0
    %1374 = vmatpush.msra.mxu0 0.0
    %1375 = vmatpush.msra.mxu0 %v1355
    %1376 = vmatmul.f32.gmra.mxu0 %v1358
    %v1377 = vpop.f32.mrf.mxu0
    %v1378 = vadd.f32 0.0, %v1377
    %1379 = vdwg.mxu0
    %1381 = vrot.lane.b32.xlu0 %v1378, 8
    %v1382 = vpop.permute.xlu0 %1381
    %vm1384 = vcmask 123968
    %1385 = vst.msk [vmem:[#allocation5] sm:$0x3] %vm1384, %v1382
    %1386 = vrot.lane.b32.xlu0 %v1177, 112
    %v1387 = vpop.permute.xlu0 %1386
    %1388 = vrot.lane.b32.xlu0 %v1201, 112
    %v1389 = vpop.permute.xlu0 %1388
    %v1390 = vsel %vm688, %v1387, 0
    %v1392 = vsel %vm688, %v1389, 0
    %1394 = vmatpush.xpose.msra.mxu0 0.0
    %1395 = vmatpush.xpose.msra.mxu0 0.0
    %1396 = vmatpush.xpose.msra.mxu0 0.0
    %1397 = vmatpush.xpose.msra.mxu0 0.0
    %1398 = vmatpush.xpose.msra.mxu0 0.0
    %1399 = vmatpush.xpose.msra.mxu0 0.0
    %1400 = vmatpush.xpose.msra.mxu0 0.0
    %1401 = vmatpush.xpose.msra.mxu0 0.0
    %1402 = vmatpush.xpose.msra.mxu0 0.0
    %1403 = vmatpush.xpose.msra.mxu0 0.0
    %1404 = vmatpush.xpose.msra.mxu0 0.0
    %1405 = vmatpush.xpose.msra.mxu0 0.0
    %1406 = vmatpush.xpose.msra.mxu0 0.0
    %1407 = vmatpush.xpose.msra.mxu0 0.0
    %1408 = vmatpush.xpose.msra.mxu0 0.0
    %1409 = vmatpush.xpose.msra.mxu0 %v1392
    %1410 = vmatmul.f32.gmra.mxu0 %v1390
    %v1411 = vpop.f32.mrf.mxu0
    %v1412 = vadd.f32 0.0, %v1411
    %1413 = vdwg.mxu0
    %v1414 = vmul.f32 %v1412, 0.35355338
    %v1415 = vsel %vm1251, %v1414, -inf
    %1416 = vmax.xlane.f32.xlu0 %v1415
    %v1417 = vpop.xlane.xlu0 %1416
    %v1418 = vsub.f32 %v1414, %v1417
    %v1419 = vmul.f32 %v1418, 1.442695
    %v1420 = vpow.pop %v1419
    %v1421 = vsel %vm1251, %v1420, 0.0
    %1422 = vadd.xlane.f32.xlu0 %v1421
    %v1423 = vpop.xlane.xlu0 %1422
    %v1424 = vrcp.pop %v1423
    %v1425 = vmul.f32 %v1423, %v1424
    %v1426 = vsub.f32 1.0, %v1425
    %v1427 = vmul.f32 %v1424, %v1426
    %v1428 = vadd.f32 %v1424, %v1427
    %vm1429 = vweird.f32 %v1423
    %vm1430 = vweird.f32 %v1424
    %vm1431 = vmor %vm1429, %vm1430
    %v1432 = vsel %vm1431, %v1424, %v1428
    %v1433 = vand.u32 2147483647, %v1423
    %vm1434 = vcmp.eq.f32.partialorder %v1433, 8.507059e+37
    %v1435 = vand.u32 %v1423, 2147483648
    %v1436 = vor.u32 1.1754944e-38, %v1435
    %v1437 = vsel %vm1434, %v1436, %v1432
    %v1438 = vmul.f32 %v1420, %v1437
    %1439 = vrot.lane.b32.xlu0 %v1222, 112
    %v1440 = vpop.permute.xlu0 %1439
    %v1443 = vsel %vm688, %v1438, 0
    %1445 = vmatpush.msra.mxu0 0.0
    %1446 = vmatpush.msra.mxu0 0.0
    %1447 = vmatpush.msra.mxu0 0.0
    %1448 = vmatpush.msra.mxu0 0.0
    %1449 = vmatpush.msra.mxu0 0.0
    %1450 = vmatpush.msra.mxu0 0.0
    %1451 = vmatpush.msra.mxu0 0.0
    %1452 = vmatpush.msra.mxu0 0.0
    %1453 = vmatpush.msra.mxu0 0.0
    %1454 = vmatpush.msra.mxu0 0.0
    %1455 = vmatpush.msra.mxu0 0.0
    %1456 = vmatpush.msra.mxu0 0.0
    %1457 = vmatpush.msra.mxu0 0.0
    %1458 = vmatpush.msra.mxu0 0.0
    %1459 = vmatpush.msra.mxu0 0.0
    %1460 = vmatpush.msra.mxu0 %v1440
    %1461 = vmatmul.f32.gmra.mxu0 %v1443
    %v1462 = vpop.f32.mrf.mxu0
    %v1463 = vadd.f32 0.0, %v1462
    %1464 = vdwg.mxu0
    %1466 = vrot.lane.b32.xlu0 %v1463, 16
    %v1467 = vpop.permute.xlu0 %1466
    %vm1469 = vcmask 189568
    %1470 = vst.msk [vmem:[#allocation5] sm:$0x3] %vm1469, %v1467
    %1471 = vrot.lane.b32.xlu0 %v1177, 104
    %v1472 = vpop.permute.xlu0 %1471
    %1473 = vrot.lane.b32.xlu0 %v1201, 104
    %v1474 = vpop.permute.xlu0 %1473
    %v1475 = vsel %vm688, %v1472, 0
    %v1477 = vsel %vm688, %v1474, 0
    %1479 = vmatpush.xpose.msra.mxu0 0.0
    %1480 = vmatpush.xpose.msra.mxu0 0.0
    %1481 = vmatpush.xpose.msra.mxu0 0.0
    %1482 = vmatpush.xpose.msra.mxu0 0.0
    %1483 = vmatpush.xpose.msra.mxu0 0.0
    %1484 = vmatpush.xpose.msra.mxu0 0.0
    %1485 = vmatpush.xpose.msra.mxu0 0.0
    %1486 = vmatpush.xpose.msra.mxu0 0.0
    %1487 = vmatpush.xpose.msra.mxu0 0.0
    %1488 = vmatpush.xpose.msra.mxu0 0.0
    %1489 = vmatpush.xpose.msra.mxu0 0.0
    %1490 = vmatpush.xpose.msra.mxu0 0.0
    %1491 = vmatpush.xpose.msra.mxu0 0.0
    %1492 = vmatpush.xpose.msra.mxu0 0.0
    %1493 = vmatpush.xpose.msra.mxu0 0.0
    %1494 = vmatpush.xpose.msra.mxu0 %v1477
    %1495 = vmatmul.f32.gmra.mxu0 %v1475
    %v1496 = vpop.f32.mrf.mxu0
    %v1497 = vadd.f32 0.0, %v1496
    %1498 = vdwg.mxu0
    %v1499 = vmul.f32 %v1497, 0.35355338
    %v1500 = vsel %vm1251, %v1499, -inf
    %1501 = vmax.xlane.f32.xlu0 %v1500
    %v1502 = vpop.xlane.xlu0 %1501
    %v1503 = vsub.f32 %v1499, %v1502
    %v1504 = vmul.f32 %v1503, 1.442695
    %v1505 = vpow.pop %v1504
    %v1506 = vsel %vm1251, %v1505, 0.0
    %1507 = vadd.xlane.f32.xlu0 %v1506
    %v1508 = vpop.xlane.xlu0 %1507
    %v1509 = vrcp.pop %v1508
    %v1510 = vmul.f32 %v1508, %v1509
    %v1511 = vsub.f32 1.0, %v1510
    %v1512 = vmul.f32 %v1509, %v1511
    %v1513 = vadd.f32 %v1509, %v1512
    %vm1514 = vweird.f32 %v1508
    %vm1515 = vweird.f32 %v1509
    %vm1516 = vmor %vm1514, %vm1515
    %v1517 = vsel %vm1516, %v1509, %v1513
    %v1518 = vand.u32 2147483647, %v1508
    %vm1519 = vcmp.eq.f32.partialorder %v1518, 8.507059e+37
    %v1520 = vand.u32 %v1508, 2147483648
    %v1521 = vor.u32 1.1754944e-38, %v1520
    %v1522 = vsel %vm1519, %v1521, %v1517
    %v1523 = vmul.f32 %v1505, %v1522
    %1524 = vrot.lane.b32.xlu0 %v1222, 104
    %v1525 = vpop.permute.xlu0 %1524
    %v1528 = vsel %vm688, %v1523, 0
    %1530 = vmatpush.msra.mxu0 0.0
    %1531 = vmatpush.msra.mxu0 0.0
    %1532 = vmatpush.msra.mxu0 0.0
    %1533 = vmatpush.msra.mxu0 0.0
    %1534 = vmatpush.msra.mxu0 0.0
    %1535 = vmatpush.msra.mxu0 0.0
    %1536 = vmatpush.msra.mxu0 0.0
    %1537 = vmatpush.msra.mxu0 0.0
    %1538 = vmatpush.msra.mxu0 0.0
    %1539 = vmatpush.msra.mxu0 0.0
    %1540 = vmatpush.msra.mxu0 0.0
    %1541 = vmatpush.msra.mxu0 0.0
    %1542 = vmatpush.msra.mxu0 0.0
    %1543 = vmatpush.msra.mxu0 0.0
    %1544 = vmatpush.msra.mxu0 0.0
    %1545 = vmatpush.msra.mxu0 %v1525
    %1546 = vmatmul.f32.gmra.mxu0 %v1528
    %v1547 = vpop.f32.mrf.mxu0
    %v1548 = vadd.f32 0.0, %v1547
    %1549 = vdwg.mxu0
    %1551 = vrot.lane.b32.xlu0 %v1548, 24
    %v1552 = vpop.permute.xlu0 %1551
    %vm1554 = vcmask 255168
    %1555 = vst.msk [vmem:[#allocation5] sm:$0x3] %vm1554, %v1552
    // Predicated region
    $region102: #{gst_forward.1} parent=1 // pred_check
      _
    $region103: #{gst_forward.1} parent=1 // pred_check_branch
      %1557 = sbr.rel (0) target = $region105
    $region104: #{gst_forward.1} parent=1 // pred_region
      %1559 = vsyncadd [#allocation4], 0
      %s1561 = sshll.u32 [#allocation5], 4
      %s1562 = int_to_ptr.vmem [resolvable:$true] %s1561
      %s1563 = sshll.u32 %s24, 4
      %s1564 = int_to_ptr.hbm [resolvable:$true] %s1563
      %1566 = dma.vmem_to_hbm [thread:$0]  %s1562, 32, %s1564, [#allocation4]
    $region105: #{gst_forward.1} parent=1 // pred_fallthru
      _
    // Predicated region
    $region106: #{gst_forward.1} parent=1 // pred_check
      _
    $region107: #{gst_forward.1} parent=1 // pred_check_branch
      %1568 = sbr.rel (0) target = $region109
    $region108: #{gst_forward.1} parent=1 // pred_region
      %1570 = dma.done [#allocation4], 32
    $region109: #{gst_forward.1} parent=1 // pred_fallthru
      _
    %1571 = vsyncpa [#allocation3], 1
    %1572 = vsyncpa [#allocation4], 1

</llo_original>
